<compile_context>
chip_gen: v5e
topology: v5e:2x2
jax: 0.10.0
libtpu: 0.0.40
codegen_flags: <defaults>
</compile_context>

<pallas_src>
import jax
import jax.numpy as jnp
from jax.experimental import pallas as pl
from jax.experimental.pallas import tpu as pltpu

# ---------------- model config (small but consistent with the module) ----------------
INPUT_SIZE = 112          # PyTorch input_size
PADDED_INPUT = 128        # lane-aligned feature dim (zero padded; zeros are inert)
D_MODEL = 128
NHEAD = 8                 # irrelevant to the math at seq_len == 1 (see note above)
NUM_LAYERS = 2
DIM_FF = 256
LN_EPS = 1e-5

BATCH = 8                 # per-branch batch; the kernel processes 3*BATCH rows

_SINGLE_TILE_MAX_ROWS = 128   # one grid step (weights resident) up to this many rows
_LARGE_ROW_TILE = 512         # max row tile for the multi-step path

assert PADDED_INPUT == D_MODEL, "packed (L+2, D, D) weight slab requires PADDED_INPUT == D_MODEL"


def _round_up(v, m):
    return ((v + m - 1) // m) * m


# ---------------------------------- kernel -------------------------------------------
def _layernorm(h, w, b):
    # PyTorch LayerNorm: biased variance, eps inside the sqrt.  All f32.
    # One-pass stats: both cross-lane reductions issue straight off h.
    inv_d = 1.0 / h.shape[-1]
    s = jnp.sum(h, axis=-1, keepdims=True)
    ss = jnp.sum(h * h, axis=-1, keepdims=True)
    mu = s * inv_d
    var = ss * inv_d - mu * mu
    return (h - mu) * jax.lax.rsqrt(var + LN_EPS) * w + b


def _mm(a, w_bf16, b_f32):
    # bf16 operands on the MXU, f32 accumulation, bias add in f32.
    return jnp.dot(a.astype(jnp.bfloat16), w_bf16,
                   preferred_element_type=jnp.float32) + b_f32


def embedding_kernel(
    x_ref,      # (ROWS, PADDED_INPUT)    bf16
    wdd_ref,    # (L+2, D, D)             bf16  [w_in | w_att[0..L-1] | w_p]
    w1_ref,     # (L, D, FF)              bf16
    w2_ref,     # (L, FF, D)              bf16
    vl_ref,     # (L, 6, D)               f32   [b_att, b2, ln1w, ln1b, ln2w, ln2b]
    b1_ref,     # (L, 1, FF)              f32
    vg_ref,     # (4, D)                  f32   [b_in, b_p, lnw, lnb]
    out_ref,    # (ROWS, D)               f32
):
    x = x_ref[...]

    # input_proj
    h = _mm(x, wdd_ref[0], vg_ref[0:1, :])

    num_layers = w1_ref.shape[0]
    for l in range(num_layers):  # static unroll over transformer layers
        # self-attention at seq_len == 1, fused:  h @ (Wv@Wo) + (bv@Wo + bo)
        attn = _mm(h, wdd_ref[1 + l], vl_ref[l, 0:1, :])
        h = _layernorm(h + attn, vl_ref[l, 2:3, :], vl_ref[l, 3:4, :])

        # feed-forward:  linear2(relu(linear1(h)))
        ff = _mm(h, w1_ref[l], b1_ref[l])
        ff = jnp.maximum(ff, 0.0)
        ff = _mm(ff, w2_ref[l], vl_ref[l, 1:2, :])
        h = _layernorm(h + ff, vl_ref[l, 4:5, :], vl_ref[l, 5:6, :])

    # output_proj + final layer_norm
    h = _mm(h, wdd_ref[1 + num_layers], vg_ref[1:2, :])
    h = _layernorm(h, vg_ref[2:3, :], vg_ref[3:4, :])

    # Output kept f32 to match the PyTorch module interface; switch to bf16 if the
    # downstream triplet loss tolerates it (halves writeback bytes).
    out_ref[...] = h.astype(out_ref.dtype)


# ------------------------------- wrapper / pallas_call --------------------------------
def _const_spec(shape):
    nd = len(shape)
    return pl.BlockSpec(shape, lambda i: (0,) * nd)


def embedding_net_pallas(x, kernel_params):
    """x: (N, INPUT_SIZE or PADDED_INPUT) f32 -> (N, D_MODEL) f32."""
    n_rows = x.shape[0]

    if n_rows <= _SINGLE_TILE_MAX_ROWS:
        # Single grid step, weights resident.  Multiple of 32 rows -> clean (16,128)
        # bf16 vreg packing for the input and every intermediate bf16 cast.
        row_tile = max(32, _round_up(n_rows, 32))
        grid_len = 1
    else:
        # At least 2 tiles (so both v7x TensorCores get work), capped at 512 rows per
        # tile; working set per tile is far below VMEM on every generation.
        row_tile = min(_LARGE_ROW_TILE, _round_up(pl.cdiv(n_rows, 2), 32))
        grid_len = pl.cdiv(n_rows, row_tile)
    padded_rows = row_tile * grid_len

    # Zero-pad rows to the tile and features 112 -> 128 (lane-dense DMA / aligned K),
    # feed the activation side of the matmuls as bf16.  With allow_input_fusion this
    # prologue fuses into the pallas-call operand instead of an extra HBM pass.
    x = jnp.pad(x, ((0, padded_rows - n_rows), (0, PADDED_INPUT - x.shape[1])))
    x = x.astype(jnp.bfloat16)

    param_specs = [_const_spec(p.shape) for p in kernel_params]

    flops = 2 * padded_rows * (
        PADDED_INPUT * D_MODEL
        + NUM_LAYERS * (D_MODEL * D_MODEL + 2 * D_MODEL * DIM_FF)
        + D_MODEL * D_MODEL
    )
    bytes_accessed = (
        padded_rows * PADDED_INPUT * 2            # bf16 input
        + padded_rows * D_MODEL * 4               # f32 output
        + sum(p.size * p.dtype.itemsize for p in kernel_params)
    )
    transcendentals = padded_rows * (2 * NUM_LAYERS + 1)  # one rsqrt per LayerNorm row

    out = pl.pallas_call(
        embedding_kernel,
        out_shape=jax.ShapeDtypeStruct((padded_rows, D_MODEL), jnp.float32),
        grid_spec=pltpu.PrefetchScalarGridSpec(
            num_scalar_prefetch=0,
            grid=(grid_len,),
            in_specs=[pl.BlockSpec((row_tile, PADDED_INPUT), lambda i: (i, 0))]
            + param_specs,
            out_specs=pl.BlockSpec((row_tile, D_MODEL), lambda i: (i, 0)),
        ),
        compiler_params=pltpu.CompilerParams(
            dimension_semantics=("parallel",),
            allow_input_fusion=[True] + [False] * len(kernel_params),
        ),
        cost_estimate=pl.CostEstimate(
            flops=flops,
            transcendentals=transcendentals,
            bytes_accessed=bytes_accessed,
        ),
    )(x, *kernel_params)

    return out[:n_rows]


@jax.jit
def siamese_forward(anchor, positive, negative, kernel_params):
    """EnhancedSiameseNetwork.forward — shared embedding net on three inputs."""
    b = anchor.shape[0]
    # One fused call over the three branches (weights shared); concat/pad/cast live in
    # the same jit so they can fuse into the kernel operand.
    x = jnp.concatenate([anchor, positive, negative], axis=0)
    out = embedding_net_pallas(x, kernel_params)
    return out[:b], out[b:2 * b], out[2 * b:]


# ------------------------------- deterministic init -----------------------------------
def init_params(key):
    def dense(key, fan_in, fan_out):
        scale = 1.0 / jnp.sqrt(jnp.float32(fan_in))
        return jax.random.normal(key, (fan_in, fan_out), jnp.float32) * scale

    keys = jax.random.split(key, 8 + NUM_LAYERS * 4)
    ki = iter(range(len(keys)))

    w_in = dense(keys[next(ki)], INPUT_SIZE, D_MODEL)
    b_in = jnp.zeros((1, D_MODEL), jnp.float32)

    wv = jnp.stack([dense(keys[next(ki)], D_MODEL, D_MODEL) for _ in range(NUM_LAYERS)])
    wo = jnp.stack([dense(keys[next(ki)], D_MODEL, D_MODEL) for _ in range(NUM_LAYERS)])
    w1 = jnp.stack([dense(keys[next(ki)], D_MODEL, DIM_FF) for _ in range(NUM_LAYERS)])
    w2 = jnp.stack([dense(keys[next(ki)], DIM_FF, D_MODEL) for _ in range(NUM_LAYERS)])

    bv = jnp.zeros((NUM_LAYERS, 1, D_MODEL), jnp.float32)
    bo = jnp.zeros((NUM_LAYERS, 1, D_MODEL), jnp.float32)
    b1 = jnp.zeros((NUM_LAYERS, 1, DIM_FF), jnp.float32)
    b2 = jnp.zeros((NUM_LAYERS, 1, D_MODEL), jnp.float32)

    ln1w = jnp.ones((NUM_LAYERS, 1, D_MODEL), jnp.float32)
    ln1b = jnp.zeros((NUM_LAYERS, 1, D_MODEL), jnp.float32)
    ln2w = jnp.ones((NUM_LAYERS, 1, D_MODEL), jnp.float32)
    ln2b = jnp.zeros((NUM_LAYERS, 1, D_MODEL), jnp.float32)

    w_p = dense(keys[next(ki)], D_MODEL, D_MODEL)
    b_p = jnp.zeros((1, D_MODEL), jnp.float32)
    lnw = jnp.ones((1, D_MODEL), jnp.float32)
    lnb = jnp.zeros((1, D_MODEL), jnp.float32)

    return (
        w_in, b_in,
        wv, bv, wo, bo,
        w1, b1, w2, b2,
        ln1w, ln1b, ln2w, ln2b,
        w_p, b_p, lnw, lnb,
    )


def prepare_params(params):
    """Fuse seq_len==1 attention, pad input-proj rows 112->128, cast matmul weights to
    bf16 and pack everything into 6 kernel refs (instead of 18 tiny DMAs)."""
    (w_in, b_in, wv, bv, wo, bo, w1, b1, w2, b2,
     ln1w, ln1b, ln2w, ln2b, w_p, b_p, lnw, lnb) = params

    # out_proj(v_proj(h)) == h @ (Wv @ Wo) + (bv @ Wo + bo); fuse in f32, cast once.
    w_att = jnp.einsum('lij,ljk->lik', wv, wo)            # (L, D, D) f32
    b_att = jnp.einsum('lij,ljk->lik', bv, wo) + bo       # (L, 1, D) f32

    w_in_p = jnp.pad(w_in, ((0, PADDED_INPUT - w_in.shape[0]), (0, 0)))

    bf = lambda a: a.astype(jnp.bfloat16)

    w_dd = bf(jnp.concatenate([w_in_p[None], w_att, w_p[None]], axis=0))  # (L+2, D, D)
    w1s = bf(w1)                                                          # (L, D, FF)
    w2s = bf(w2)                                                          # (L, FF, D)
    vl = jnp.concatenate([b_att, b2, ln1w, ln1b, ln2w, ln2b], axis=1)     # (L, 6, D) f32
    b1s = b1                                                              # (L, 1, FF) f32
    vg = jnp.concatenate([b_in, b_p, lnw, lnb], axis=0)                   # (4, D) f32

    return (w_dd, w1s, w2s, vl, b1s, vg)


# ------------------------------- pure-JAX reference -----------------------------------
def embedding_net_ref(x, params):
    (w_in, b_in, wv, bv, wo, bo, w1, b1, w2, b2,
     ln1w, ln1b, ln2w, ln2b, w_p, b_p, lnw, lnb) = params

    def ln(h, w, b):
        mu = jnp.mean(h, -1, keepdims=True)
        var = jnp.mean((h - mu) ** 2, -1, keepdims=True)
        return (h - mu) / jnp.sqrt(var + LN_EPS) * w + b

    h = x @ w_in + b_in
    for l in range(NUM_LAYERS):
        attn = (h @ wv[l] + bv[l]) @ wo[l] + bo[l]
        h = ln(h + attn, ln1w[l], ln1b[l])
        ff = jnp.maximum(h @ w1[l] + b1[l], 0.0) @ w2[l] + b2[l]
        h = ln(h + ff, ln2w[l], ln2b[l])
    h = h @ w_p + b_p
    return ln(h, lnw, lnb)


# --------------------------------------- main -----------------------------------------
if __name__ == "__main__":
    key = jax.random.PRNGKey(0)
    k_params, k_a, k_p, k_n = jax.random.split(key, 4)

    params = init_params(k_params)
    kernel_params = prepare_params(params)

    anchor = jax.random.normal(k_a, (BATCH, INPUT_SIZE), jnp.float32)
    positive = jax.random.normal(k_p, (BATCH, INPUT_SIZE), jnp.float32)
    negative = jax.random.normal(k_n, (BATCH, INPUT_SIZE), jnp.float32)

    out_a, out_p, out_n = siamese_forward(anchor, positive, negative, kernel_params)
    jax.block_until_ready((out_a, out_p, out_n))

    assert out_a.shape == (BATCH, D_MODEL)
    assert out_p.shape == (BATCH, D_MODEL)
    assert out_n.shape == (BATCH, D_MODEL)

    # Loose sanity check against an f32 reference (kernel matmuls use bf16 operands).
    ref = embedding_net_ref(jnp.concatenate([anchor, positive, negative], 0), params)
    got = jnp.concatenate([out_a, out_p, out_n], 0)
    max_err = float(jnp.max(jnp.abs(got - ref)))
    assert max_err < 0.2, f"max abs error vs f32 reference too large: {max_err}"

    print("KERNEL_OK")
</pallas_src>

<mosaic_0001>
module attributes {stable_mosaic.version = 11 : i64} {
  func.func @embedding_kernel(%arg0: i32, %arg1: memref<32x128xbf16, #tpu.memory_space<vmem>>, %arg2: memref<4x128x128xbf16, #tpu.memory_space<vmem>>, %arg3: memref<2x128x256xbf16, #tpu.memory_space<vmem>>, %arg4: memref<2x256x128xbf16, #tpu.memory_space<vmem>>, %arg5: memref<2x6x128xf32, #tpu.memory_space<vmem>>, %arg6: memref<2x1x256xf32, #tpu.memory_space<vmem>>, %arg7: memref<4x128xf32, #tpu.memory_space<vmem>>, %arg8: memref<32x128xf32, #tpu.memory_space<vmem>>) attributes {dimension_semantics = [#tpu.dimension_semantics<parallel>], iteration_bounds = array<i64: 1>, scalar_prefetch = 0 : i64, scratch_operands = 0 : i64, tpu.core_type = #tpu.core_type<tc>, window_params = [{transform_indices = @transform_0, window_bounds = array<i64: 32, 128>}, {pipeline_mode = #tpu.pipeline_mode<synchronous>, transform_indices = @transform_1, window_bounds = array<i64: 4, 128, 128>}, {pipeline_mode = #tpu.pipeline_mode<synchronous>, transform_indices = @transform_2, window_bounds = array<i64: 2, 128, 256>}, {pipeline_mode = #tpu.pipeline_mode<synchronous>, transform_indices = @transform_3, window_bounds = array<i64: 2, 256, 128>}, {pipeline_mode = #tpu.pipeline_mode<synchronous>, transform_indices = @transform_4, window_bounds = array<i64: 2, 6, 128>}, {pipeline_mode = #tpu.pipeline_mode<synchronous>, transform_indices = @transform_5, window_bounds = array<i64: 2, 1, 256>}, {pipeline_mode = #tpu.pipeline_mode<synchronous>, transform_indices = @transform_6, window_bounds = array<i64: 4, 128>}, {transform_indices = @transform_7, window_bounds = array<i64: 32, 128>}]} {
    %c0 = arith.constant 0 : index
    %c0_0 = arith.constant 0 : index
    %0 = vector.load %arg1[%c0, %c0_0] : memref<32x128xbf16, #tpu.memory_space<vmem>>, vector<32x128xbf16>
    %c0_1 = arith.constant 0 : index
    %c0_2 = arith.constant 0 : index
    %c0_3 = arith.constant 0 : index
    %1 = vector.load %arg2[%c0_1, %c0_2, %c0_3] : memref<4x128x128xbf16, #tpu.memory_space<vmem>>, vector<1x128x128xbf16>
    %2 = vector.shape_cast %1 : vector<1x128x128xbf16> to vector<128x128xbf16>
    %c0_4 = arith.constant 0 : index
    %c0_5 = arith.constant 0 : index
    %3 = vector.load %arg7[%c0_4, %c0_5] : memref<4x128xf32, #tpu.memory_space<vmem>>, vector<1x128xf32>
    %cst = arith.constant dense<0.000000e+00> : vector<32x128xf32>
    %4 = tpu.matmul %0, %2, %cst {dimension_numbers = #tpu.dot_dimension_numbers<[1], [0], [0], [1], [0, 0, 1, 1], [], []>} : vector<32x128xbf16>, vector<128x128xbf16>, vector<32x128xf32> -> vector<32x128xf32>
    %5 = vector.broadcast %3 : vector<1x128xf32> to vector<32x128xf32>
    %6 = arith.addf %4, %5 : vector<32x128xf32>
    %c1 = arith.constant 1 : index
    %c0_6 = arith.constant 0 : index
    %c0_7 = arith.constant 0 : index
    %7 = vector.load %arg2[%c1, %c0_6, %c0_7] : memref<4x128x128xbf16, #tpu.memory_space<vmem>>, vector<1x128x128xbf16>
    %8 = vector.shape_cast %7 : vector<1x128x128xbf16> to vector<128x128xbf16>
    %c0_8 = arith.constant 0 : index
    %c0_9 = arith.constant 0 : index
    %c0_10 = arith.constant 0 : index
    %9 = vector.load %arg5[%c0_8, %c0_9, %c0_10] : memref<2x6x128xf32, #tpu.memory_space<vmem>>, vector<1x1x128xf32>
    %10 = vector.shape_cast %9 : vector<1x1x128xf32> to vector<1x128xf32>
    %11 = arith.truncf %6 : vector<32x128xf32> to vector<32x128xbf16>
    %cst_11 = arith.constant dense<0.000000e+00> : vector<32x128xf32>
    %12 = tpu.matmul %11, %8, %cst_11 {dimension_numbers = #tpu.dot_dimension_numbers<[1], [0], [0], [1], [0, 0, 1, 1], [], []>} : vector<32x128xbf16>, vector<128x128xbf16>, vector<32x128xf32> -> vector<32x128xf32>
    %13 = vector.broadcast %10 : vector<1x128xf32> to vector<32x128xf32>
    %14 = arith.addf %12, %13 : vector<32x128xf32>
    %15 = arith.addf %6, %14 : vector<32x128xf32>
    %c0_12 = arith.constant 0 : index
    %c2 = arith.constant 2 : index
    %c0_13 = arith.constant 0 : index
    %16 = vector.load %arg5[%c0_12, %c2, %c0_13] : memref<2x6x128xf32, #tpu.memory_space<vmem>>, vector<1x1x128xf32>
    %17 = vector.shape_cast %16 : vector<1x1x128xf32> to vector<1x128xf32>
    %c0_14 = arith.constant 0 : index
    %c3 = arith.constant 3 : index
    %c0_15 = arith.constant 0 : index
    %18 = vector.load %arg5[%c0_14, %c3, %c0_15] : memref<2x6x128xf32, #tpu.memory_space<vmem>>, vector<1x1x128xf32>
    %19 = vector.shape_cast %18 : vector<1x1x128xf32> to vector<1x128xf32>
    %cst_16 = arith.constant dense<0.000000e+00> : vector<32xf32>
    %20 = vector.multi_reduction <add>, %15, %cst_16 [1] : vector<32x128xf32> to vector<32xf32>
    %21 = vector.shape_cast %20 : vector<32xf32> to vector<32x1xf32>
    %22 = arith.mulf %15, %15 : vector<32x128xf32>
    %cst_17 = arith.constant dense<0.000000e+00> : vector<32xf32>
    %23 = vector.multi_reduction <add>, %22, %cst_17 [1] : vector<32x128xf32> to vector<32xf32>
    %24 = vector.shape_cast %23 : vector<32xf32> to vector<32x1xf32>
    %cst_18 = arith.constant 7.812500e-03 : f32
    %25 = vector.broadcast %cst_18 : f32 to vector<32x1xf32>
    %26 = arith.mulf %21, %25 : vector<32x1xf32>
    %cst_19 = arith.constant 7.812500e-03 : f32
    %27 = vector.broadcast %cst_19 : f32 to vector<32x1xf32>
    %28 = arith.mulf %24, %27 : vector<32x1xf32>
    %29 = arith.mulf %26, %26 : vector<32x1xf32>
    %30 = arith.subf %28, %29 : vector<32x1xf32>
    %31 = vector.broadcast %26 : vector<32x1xf32> to vector<32x128xf32>
    %32 = arith.subf %15, %31 : vector<32x128xf32>
    %cst_20 = arith.constant 9.99999974E-6 : f32
    %33 = vector.broadcast %cst_20 : f32 to vector<32x1xf32>
    %34 = arith.addf %30, %33 : vector<32x1xf32>
    %35 = math.rsqrt %34 : vector<32x1xf32>
    %36 = vector.broadcast %35 : vector<32x1xf32> to vector<32x128xf32>
    %37 = arith.mulf %32, %36 : vector<32x128xf32>
    %38 = vector.broadcast %17 : vector<1x128xf32> to vector<32x128xf32>
    %39 = arith.mulf %37, %38 : vector<32x128xf32>
    %40 = vector.broadcast %19 : vector<1x128xf32> to vector<32x128xf32>
    %41 = arith.addf %39, %40 : vector<32x128xf32>
    %c0_21 = arith.constant 0 : index
    %c0_22 = arith.constant 0 : index
    %c0_23 = arith.constant 0 : index
    %42 = vector.load %arg3[%c0_21, %c0_22, %c0_23] : memref<2x128x256xbf16, #tpu.memory_space<vmem>>, vector<1x128x256xbf16>
    %43 = vector.shape_cast %42 : vector<1x128x256xbf16> to vector<128x256xbf16>
    %c0_24 = arith.constant 0 : index
    %c0_25 = arith.constant 0 : index
    %c0_26 = arith.constant 0 : index
    %44 = vector.load %arg6[%c0_24, %c0_25, %c0_26] : memref<2x1x256xf32, #tpu.memory_space<vmem>>, vector<1x1x256xf32>
    %45 = vector.shape_cast %44 : vector<1x1x256xf32> to vector<1x256xf32>
    %46 = arith.truncf %41 : vector<32x128xf32> to vector<32x128xbf16>
    %cst_27 = arith.constant dense<0.000000e+00> : vector<32x256xf32>
    %47 = tpu.matmul %46, %43, %cst_27 {dimension_numbers = #tpu.dot_dimension_numbers<[1], [0], [0], [1], [0, 0, 1, 1], [], []>} : vector<32x128xbf16>, vector<128x256xbf16>, vector<32x256xf32> -> vector<32x256xf32>
    %48 = vector.broadcast %45 : vector<1x256xf32> to vector<32x256xf32>
    %49 = arith.addf %47, %48 : vector<32x256xf32>
    %cst_28 = arith.constant 0.000000e+00 : f32
    %50 = vector.broadcast %cst_28 : f32 to vector<32x256xf32>
    %51 = arith.maximumf %49, %50 : vector<32x256xf32>
    %c0_29 = arith.constant 0 : index
    %c0_30 = arith.constant 0 : index
    %c0_31 = arith.constant 0 : index
    %52 = vector.load %arg4[%c0_29, %c0_30, %c0_31] : memref<2x256x128xbf16, #tpu.memory_space<vmem>>, vector<1x256x128xbf16>
    %53 = vector.shape_cast %52 : vector<1x256x128xbf16> to vector<256x128xbf16>
    %c0_32 = arith.constant 0 : index
    %c1_33 = arith.constant 1 : index
    %c0_34 = arith.constant 0 : index
    %54 = vector.load %arg5[%c0_32, %c1_33, %c0_34] : memref<2x6x128xf32, #tpu.memory_space<vmem>>, vector<1x1x128xf32>
    %55 = vector.shape_cast %54 : vector<1x1x128xf32> to vector<1x128xf32>
    %56 = arith.truncf %51 : vector<32x256xf32> to vector<32x256xbf16>
    %cst_35 = arith.constant dense<0.000000e+00> : vector<32x128xf32>
    %57 = tpu.matmul %56, %53, %cst_35 {dimension_numbers = #tpu.dot_dimension_numbers<[1], [0], [0], [1], [0, 0, 1, 1], [], []>} : vector<32x256xbf16>, vector<256x128xbf16>, vector<32x128xf32> -> vector<32x128xf32>
    %58 = vector.broadcast %55 : vector<1x128xf32> to vector<32x128xf32>
    %59 = arith.addf %57, %58 : vector<32x128xf32>
    %60 = arith.addf %41, %59 : vector<32x128xf32>
    %c0_36 = arith.constant 0 : index
    %c4 = arith.constant 4 : index
    %c0_37 = arith.constant 0 : index
    %61 = vector.load %arg5[%c0_36, %c4, %c0_37] : memref<2x6x128xf32, #tpu.memory_space<vmem>>, vector<1x1x128xf32>
    %62 = vector.shape_cast %61 : vector<1x1x128xf32> to vector<1x128xf32>
    %c0_38 = arith.constant 0 : index
    %c5 = arith.constant 5 : index
    %c0_39 = arith.constant 0 : index
    %63 = vector.load %arg5[%c0_38, %c5, %c0_39] : memref<2x6x128xf32, #tpu.memory_space<vmem>>, vector<1x1x128xf32>
    %64 = vector.shape_cast %63 : vector<1x1x128xf32> to vector<1x128xf32>
    %cst_40 = arith.constant dense<0.000000e+00> : vector<32xf32>
    %65 = vector.multi_reduction <add>, %60, %cst_40 [1] : vector<32x128xf32> to vector<32xf32>
    %66 = vector.shape_cast %65 : vector<32xf32> to vector<32x1xf32>
    %67 = arith.mulf %60, %60 : vector<32x128xf32>
    %cst_41 = arith.constant dense<0.000000e+00> : vector<32xf32>
    %68 = vector.multi_reduction <add>, %67, %cst_41 [1] : vector<32x128xf32> to vector<32xf32>
    %69 = vector.shape_cast %68 : vector<32xf32> to vector<32x1xf32>
    %cst_42 = arith.constant 7.812500e-03 : f32
    %70 = vector.broadcast %cst_42 : f32 to vector<32x1xf32>
    %71 = arith.mulf %66, %70 : vector<32x1xf32>
    %cst_43 = arith.constant 7.812500e-03 : f32
    %72 = vector.broadcast %cst_43 : f32 to vector<32x1xf32>
    %73 = arith.mulf %69, %72 : vector<32x1xf32>
    %74 = arith.mulf %71, %71 : vector<32x1xf32>
    %75 = arith.subf %73, %74 : vector<32x1xf32>
    %76 = vector.broadcast %71 : vector<32x1xf32> to vector<32x128xf32>
    %77 = arith.subf %60, %76 : vector<32x128xf32>
    %cst_44 = arith.constant 9.99999974E-6 : f32
    %78 = vector.broadcast %cst_44 : f32 to vector<32x1xf32>
    %79 = arith.addf %75, %78 : vector<32x1xf32>
    %80 = math.rsqrt %79 : vector<32x1xf32>
    %81 = vector.broadcast %80 : vector<32x1xf32> to vector<32x128xf32>
    %82 = arith.mulf %77, %81 : vector<32x128xf32>
    %83 = vector.broadcast %62 : vector<1x128xf32> to vector<32x128xf32>
    %84 = arith.mulf %82, %83 : vector<32x128xf32>
    %85 = vector.broadcast %64 : vector<1x128xf32> to vector<32x128xf32>
    %86 = arith.addf %84, %85 : vector<32x128xf32>
    %c2_45 = arith.constant 2 : index
    %c0_46 = arith.constant 0 : index
    %c0_47 = arith.constant 0 : index
    %87 = vector.load %arg2[%c2_45, %c0_46, %c0_47] : memref<4x128x128xbf16, #tpu.memory_space<vmem>>, vector<1x128x128xbf16>
    %88 = vector.shape_cast %87 : vector<1x128x128xbf16> to vector<128x128xbf16>
    %c1_48 = arith.constant 1 : index
    %c0_49 = arith.constant 0 : index
    %c0_50 = arith.constant 0 : index
    %89 = vector.load %arg5[%c1_48, %c0_49, %c0_50] : memref<2x6x128xf32, #tpu.memory_space<vmem>>, vector<1x1x128xf32>
    %90 = vector.shape_cast %89 : vector<1x1x128xf32> to vector<1x128xf32>
    %91 = arith.truncf %86 : vector<32x128xf32> to vector<32x128xbf16>
    %cst_51 = arith.constant dense<0.000000e+00> : vector<32x128xf32>
    %92 = tpu.matmul %91, %88, %cst_51 {dimension_numbers = #tpu.dot_dimension_numbers<[1], [0], [0], [1], [0, 0, 1, 1], [], []>} : vector<32x128xbf16>, vector<128x128xbf16>, vector<32x128xf32> -> vector<32x128xf32>
    %93 = vector.broadcast %90 : vector<1x128xf32> to vector<32x128xf32>
    %94 = arith.addf %92, %93 : vector<32x128xf32>
    %95 = arith.addf %86, %94 : vector<32x128xf32>
    %c1_52 = arith.constant 1 : index
    %c2_53 = arith.constant 2 : index
    %c0_54 = arith.constant 0 : index
    %96 = vector.load %arg5[%c1_52, %c2_53, %c0_54] : memref<2x6x128xf32, #tpu.memory_space<vmem>>, vector<1x1x128xf32>
    %97 = vector.shape_cast %96 : vector<1x1x128xf32> to vector<1x128xf32>
    %c1_55 = arith.constant 1 : index
    %c3_56 = arith.constant 3 : index
    %c0_57 = arith.constant 0 : index
    %98 = vector.load %arg5[%c1_55, %c3_56, %c0_57] : memref<2x6x128xf32, #tpu.memory_space<vmem>>, vector<1x1x128xf32>
    %99 = vector.shape_cast %98 : vector<1x1x128xf32> to vector<1x128xf32>
    %cst_58 = arith.constant dense<0.000000e+00> : vector<32xf32>
    %100 = vector.multi_reduction <add>, %95, %cst_58 [1] : vector<32x128xf32> to vector<32xf32>
    %101 = vector.shape_cast %100 : vector<32xf32> to vector<32x1xf32>
    %102 = arith.mulf %95, %95 : vector<32x128xf32>
    %cst_59 = arith.constant dense<0.000000e+00> : vector<32xf32>
    %103 = vector.multi_reduction <add>, %102, %cst_59 [1] : vector<32x128xf32> to vector<32xf32>
    %104 = vector.shape_cast %103 : vector<32xf32> to vector<32x1xf32>
    %cst_60 = arith.constant 7.812500e-03 : f32
    %105 = vector.broadcast %cst_60 : f32 to vector<32x1xf32>
    %106 = arith.mulf %101, %105 : vector<32x1xf32>
    %cst_61 = arith.constant 7.812500e-03 : f32
    %107 = vector.broadcast %cst_61 : f32 to vector<32x1xf32>
    %108 = arith.mulf %104, %107 : vector<32x1xf32>
    %109 = arith.mulf %106, %106 : vector<32x1xf32>
    %110 = arith.subf %108, %109 : vector<32x1xf32>
    %111 = vector.broadcast %106 : vector<32x1xf32> to vector<32x128xf32>
    %112 = arith.subf %95, %111 : vector<32x128xf32>
    %cst_62 = arith.constant 9.99999974E-6 : f32
    %113 = vector.broadcast %cst_62 : f32 to vector<32x1xf32>
    %114 = arith.addf %110, %113 : vector<32x1xf32>
    %115 = math.rsqrt %114 : vector<32x1xf32>
    %116 = vector.broadcast %115 : vector<32x1xf32> to vector<32x128xf32>
    %117 = arith.mulf %112, %116 : vector<32x128xf32>
    %118 = vector.broadcast %97 : vector<1x128xf32> to vector<32x128xf32>
    %119 = arith.mulf %117, %118 : vector<32x128xf32>
    %120 = vector.broadcast %99 : vector<1x128xf32> to vector<32x128xf32>
    %121 = arith.addf %119, %120 : vector<32x128xf32>
    %c1_63 = arith.constant 1 : index
    %c0_64 = arith.constant 0 : index
    %c0_65 = arith.constant 0 : index
    %122 = vector.load %arg3[%c1_63, %c0_64, %c0_65] : memref<2x128x256xbf16, #tpu.memory_space<vmem>>, vector<1x128x256xbf16>
    %123 = vector.shape_cast %122 : vector<1x128x256xbf16> to vector<128x256xbf16>
    %c1_66 = arith.constant 1 : index
    %c0_67 = arith.constant 0 : index
    %c0_68 = arith.constant 0 : index
    %124 = vector.load %arg6[%c1_66, %c0_67, %c0_68] : memref<2x1x256xf32, #tpu.memory_space<vmem>>, vector<1x1x256xf32>
    %125 = vector.shape_cast %124 : vector<1x1x256xf32> to vector<1x256xf32>
    %126 = arith.truncf %121 : vector<32x128xf32> to vector<32x128xbf16>
    %cst_69 = arith.constant dense<0.000000e+00> : vector<32x256xf32>
    %127 = tpu.matmul %126, %123, %cst_69 {dimension_numbers = #tpu.dot_dimension_numbers<[1], [0], [0], [1], [0, 0, 1, 1], [], []>} : vector<32x128xbf16>, vector<128x256xbf16>, vector<32x256xf32> -> vector<32x256xf32>
    %128 = vector.broadcast %125 : vector<1x256xf32> to vector<32x256xf32>
    %129 = arith.addf %127, %128 : vector<32x256xf32>
    %cst_70 = arith.constant 0.000000e+00 : f32
    %130 = vector.broadcast %cst_70 : f32 to vector<32x256xf32>
    %131 = arith.maximumf %129, %130 : vector<32x256xf32>
    %c1_71 = arith.constant 1 : index
    %c0_72 = arith.constant 0 : index
    %c0_73 = arith.constant 0 : index
    %132 = vector.load %arg4[%c1_71, %c0_72, %c0_73] : memref<2x256x128xbf16, #tpu.memory_space<vmem>>, vector<1x256x128xbf16>
    %133 = vector.shape_cast %132 : vector<1x256x128xbf16> to vector<256x128xbf16>
    %c1_74 = arith.constant 1 : index
    %c1_75 = arith.constant 1 : index
    %c0_76 = arith.constant 0 : index
    %134 = vector.load %arg5[%c1_74, %c1_75, %c0_76] : memref<2x6x128xf32, #tpu.memory_space<vmem>>, vector<1x1x128xf32>
    %135 = vector.shape_cast %134 : vector<1x1x128xf32> to vector<1x128xf32>
    %136 = arith.truncf %131 : vector<32x256xf32> to vector<32x256xbf16>
    %cst_77 = arith.constant dense<0.000000e+00> : vector<32x128xf32>
    %137 = tpu.matmul %136, %133, %cst_77 {dimension_numbers = #tpu.dot_dimension_numbers<[1], [0], [0], [1], [0, 0, 1, 1], [], []>} : vector<32x256xbf16>, vector<256x128xbf16>, vector<32x128xf32> -> vector<32x128xf32>
    %138 = vector.broadcast %135 : vector<1x128xf32> to vector<32x128xf32>
    %139 = arith.addf %137, %138 : vector<32x128xf32>
    %140 = arith.addf %121, %139 : vector<32x128xf32>
    %c1_78 = arith.constant 1 : index
    %c4_79 = arith.constant 4 : index
    %c0_80 = arith.constant 0 : index
    %141 = vector.load %arg5[%c1_78, %c4_79, %c0_80] : memref<2x6x128xf32, #tpu.memory_space<vmem>>, vector<1x1x128xf32>
    %142 = vector.shape_cast %141 : vector<1x1x128xf32> to vector<1x128xf32>
    %c1_81 = arith.constant 1 : index
    %c5_82 = arith.constant 5 : index
    %c0_83 = arith.constant 0 : index
    %143 = vector.load %arg5[%c1_81, %c5_82, %c0_83] : memref<2x6x128xf32, #tpu.memory_space<vmem>>, vector<1x1x128xf32>
    %144 = vector.shape_cast %143 : vector<1x1x128xf32> to vector<1x128xf32>
    %cst_84 = arith.constant dense<0.000000e+00> : vector<32xf32>
    %145 = vector.multi_reduction <add>, %140, %cst_84 [1] : vector<32x128xf32> to vector<32xf32>
    %146 = vector.shape_cast %145 : vector<32xf32> to vector<32x1xf32>
    %147 = arith.mulf %140, %140 : vector<32x128xf32>
    %cst_85 = arith.constant dense<0.000000e+00> : vector<32xf32>
    %148 = vector.multi_reduction <add>, %147, %cst_85 [1] : vector<32x128xf32> to vector<32xf32>
    %149 = vector.shape_cast %148 : vector<32xf32> to vector<32x1xf32>
    %cst_86 = arith.constant 7.812500e-03 : f32
    %150 = vector.broadcast %cst_86 : f32 to vector<32x1xf32>
    %151 = arith.mulf %146, %150 : vector<32x1xf32>
    %cst_87 = arith.constant 7.812500e-03 : f32
    %152 = vector.broadcast %cst_87 : f32 to vector<32x1xf32>
    %153 = arith.mulf %149, %152 : vector<32x1xf32>
    %154 = arith.mulf %151, %151 : vector<32x1xf32>
    %155 = arith.subf %153, %154 : vector<32x1xf32>
    %156 = vector.broadcast %151 : vector<32x1xf32> to vector<32x128xf32>
    %157 = arith.subf %140, %156 : vector<32x128xf32>
    %cst_88 = arith.constant 9.99999974E-6 : f32
    %158 = vector.broadcast %cst_88 : f32 to vector<32x1xf32>
    %159 = arith.addf %155, %158 : vector<32x1xf32>
    %160 = math.rsqrt %159 : vector<32x1xf32>
    %161 = vector.broadcast %160 : vector<32x1xf32> to vector<32x128xf32>
    %162 = arith.mulf %157, %161 : vector<32x128xf32>
    %163 = vector.broadcast %142 : vector<1x128xf32> to vector<32x128xf32>
    %164 = arith.mulf %162, %163 : vector<32x128xf32>
    %165 = vector.broadcast %144 : vector<1x128xf32> to vector<32x128xf32>
    %166 = arith.addf %164, %165 : vector<32x128xf32>
    %c3_89 = arith.constant 3 : index
    %c0_90 = arith.constant 0 : index
    %c0_91 = arith.constant 0 : index
    %167 = vector.load %arg2[%c3_89, %c0_90, %c0_91] : memref<4x128x128xbf16, #tpu.memory_space<vmem>>, vector<1x128x128xbf16>
    %168 = vector.shape_cast %167 : vector<1x128x128xbf16> to vector<128x128xbf16>
    %c1_92 = arith.constant 1 : index
    %c0_93 = arith.constant 0 : index
    %169 = vector.load %arg7[%c1_92, %c0_93] : memref<4x128xf32, #tpu.memory_space<vmem>>, vector<1x128xf32>
    %170 = arith.truncf %166 : vector<32x128xf32> to vector<32x128xbf16>
    %cst_94 = arith.constant dense<0.000000e+00> : vector<32x128xf32>
    %171 = tpu.matmul %170, %168, %cst_94 {dimension_numbers = #tpu.dot_dimension_numbers<[1], [0], [0], [1], [0, 0, 1, 1], [], []>} : vector<32x128xbf16>, vector<128x128xbf16>, vector<32x128xf32> -> vector<32x128xf32>
    %172 = vector.broadcast %169 : vector<1x128xf32> to vector<32x128xf32>
    %173 = arith.addf %171, %172 : vector<32x128xf32>
    %c2_95 = arith.constant 2 : index
    %c0_96 = arith.constant 0 : index
    %174 = vector.load %arg7[%c2_95, %c0_96] : memref<4x128xf32, #tpu.memory_space<vmem>>, vector<1x128xf32>
    %c3_97 = arith.constant 3 : index
    %c0_98 = arith.constant 0 : index
    %175 = vector.load %arg7[%c3_97, %c0_98] : memref<4x128xf32, #tpu.memory_space<vmem>>, vector<1x128xf32>
    %cst_99 = arith.constant dense<0.000000e+00> : vector<32xf32>
    %176 = vector.multi_reduction <add>, %173, %cst_99 [1] : vector<32x128xf32> to vector<32xf32>
    %177 = vector.shape_cast %176 : vector<32xf32> to vector<32x1xf32>
    %178 = arith.mulf %173, %173 : vector<32x128xf32>
    %cst_100 = arith.constant dense<0.000000e+00> : vector<32xf32>
    %179 = vector.multi_reduction <add>, %178, %cst_100 [1] : vector<32x128xf32> to vector<32xf32>
    %180 = vector.shape_cast %179 : vector<32xf32> to vector<32x1xf32>
    %cst_101 = arith.constant 7.812500e-03 : f32
    %181 = vector.broadcast %cst_101 : f32 to vector<32x1xf32>
    %182 = arith.mulf %177, %181 : vector<32x1xf32>
    %cst_102 = arith.constant 7.812500e-03 : f32
    %183 = vector.broadcast %cst_102 : f32 to vector<32x1xf32>
    %184 = arith.mulf %180, %183 : vector<32x1xf32>
    %185 = arith.mulf %182, %182 : vector<32x1xf32>
    %186 = arith.subf %184, %185 : vector<32x1xf32>
    %187 = vector.broadcast %182 : vector<32x1xf32> to vector<32x128xf32>
    %188 = arith.subf %173, %187 : vector<32x128xf32>
    %cst_103 = arith.constant 9.99999974E-6 : f32
    %189 = vector.broadcast %cst_103 : f32 to vector<32x1xf32>
    %190 = arith.addf %186, %189 : vector<32x1xf32>
    %191 = math.rsqrt %190 : vector<32x1xf32>
    %192 = vector.broadcast %191 : vector<32x1xf32> to vector<32x128xf32>
    %193 = arith.mulf %188, %192 : vector<32x128xf32>
    %194 = vector.broadcast %174 : vector<1x128xf32> to vector<32x128xf32>
    %195 = arith.mulf %193, %194 : vector<32x128xf32>
    %196 = vector.broadcast %175 : vector<1x128xf32> to vector<32x128xf32>
    %197 = arith.addf %195, %196 : vector<32x128xf32>
    %c0_104 = arith.constant 0 : index
    %c0_105 = arith.constant 0 : index
    %198 = vector.load %arg8[%c0_104, %c0_105] : memref<32x128xf32, #tpu.memory_space<vmem>>, vector<32x128xf32>
    tpu.vector_store %arg8[%c0_104, %c0_105], %197 {strides = array<i32>} : memref<32x128xf32, #tpu.memory_space<vmem>>, vector<32x128xf32>,
    return
  }
  func.func @transform_0(%arg0: i32) -> (i32, i32) {
    %c0_i32 = arith.constant 0 : i32
    %c0_i32_0 = arith.constant 0 : i32
    return %arg0, %c0_i32 : i32, i32
  }
  func.func @transform_1(%arg0: i32) -> (i32, i32, i32) {
    %c0_i32 = arith.constant 0 : i32
    %c0_i32_0 = arith.constant 0 : i32
    %c0_i32_1 = arith.constant 0 : i32
    %c0_i32_2 = arith.constant 0 : i32
    return %c0_i32, %c0_i32_0, %c0_i32_1 : i32, i32, i32
  }
  func.func @transform_2(%arg0: i32) -> (i32, i32, i32) {
    %c0_i32 = arith.constant 0 : i32
    %c0_i32_0 = arith.constant 0 : i32
    %c0_i32_1 = arith.constant 0 : i32
    %c0_i32_2 = arith.constant 0 : i32
    return %c0_i32, %c0_i32_0, %c0_i32_1 : i32, i32, i32
  }
  func.func @transform_3(%arg0: i32) -> (i32, i32, i32) {
    %c0_i32 = arith.constant 0 : i32
    %c0_i32_0 = arith.constant 0 : i32
    %c0_i32_1 = arith.constant 0 : i32
    %c0_i32_2 = arith.constant 0 : i32
    return %c0_i32, %c0_i32_0, %c0_i32_1 : i32, i32, i32
  }
  func.func @transform_4(%arg0: i32) -> (i32, i32, i32) {
    %c0_i32 = arith.constant 0 : i32
    %c0_i32_0 = arith.constant 0 : i32
    %c0_i32_1 = arith.constant 0 : i32
    %c0_i32_2 = arith.constant 0 : i32
    return %c0_i32, %c0_i32_0, %c0_i32_1 : i32, i32, i32
  }
  func.func @transform_5(%arg0: i32) -> (i32, i32, i32) {
    %c0_i32 = arith.constant 0 : i32
    %c0_i32_0 = arith.constant 0 : i32
    %c0_i32_1 = arith.constant 0 : i32
    %c0_i32_2 = arith.constant 0 : i32
    return %c0_i32, %c0_i32_0, %c0_i32_1 : i32, i32, i32
  }
  func.func @transform_6(%arg0: i32) -> (i32, i32) {
    %c0_i32 = arith.constant 0 : i32
    %c0_i32_0 = arith.constant 0 : i32
    %c0_i32_1 = arith.constant 0 : i32
    return %c0_i32, %c0_i32_0 : i32, i32
  }
  func.func @transform_7(%arg0: i32) -> (i32, i32) {
    %c0_i32 = arith.constant 0 : i32
    %c0_i32_0 = arith.constant 0 : i32
    return %arg0, %c0_i32 : i32, i32
  }
}

</mosaic_0001>

<llo_original>
// kernel: siamese_forward.2
$region0: #{siamese_forward.2}
  #allocation0 [shape = 'u32[]', space=smem, size = 0x4, offset = 0x4, fixed_abs, tag = 'smem constant byte address 0x4 - core index']
  #allocation1 [shape = 'u32[72,128]{1,0:T(1,128)}', space=vmem, size = 0x9000, scoped, tag = 'internal scratch']
  #allocation2 [shape = 'u32[2048]{0}', space=vmem, size = 0x2000, scoped, tag = 'scoped memory for siamese_forward.2']
  #allocation3 [shape = 'u32[2048]{0}', space=vmem, size = 0x2000, scoped, tag = 'scoped memory for siamese_forward.2']
  #allocation4 [shape = 'u32[2048]{0}', space=vmem, size = 0x2000, scoped, tag = 'scoped memory for siamese_forward.2']
  #allocation5 [shape = 'u32[2048]{0}', space=vmem, size = 0x2000, scoped, tag = 'scoped memory for siamese_forward.2']
  #allocation6 [shape = 'u32[2048]{0}', space=vmem, size = 0x2000, scoped, tag = 'scoped memory for siamese_forward.2']
  #allocation7 [shape = 'u32[2048]{0}', space=vmem, size = 0x2000, scoped, tag = 'scoped memory for siamese_forward.2']
  #allocation8 [shape = 'u32[2048]{0}', space=vmem, size = 0x2000, scoped, tag = 'scoped memory for siamese_forward.2']
  #allocation9 [shape = 'u32[2048]{0}', space=vmem, size = 0x2000, scoped, tag = 'scoped memory for siamese_forward.2']
  #allocation10 [shape = 'u32[2048]{0}', space=vmem, size = 0x2000, scoped, tag = 'scoped memory for siamese_forward.2']
  #allocation11 [shape = 'u32[2048]{0}', space=vmem, size = 0x2000, scoped, tag = 'scoped memory for siamese_forward.2']
  #allocation12 [shape = 'u32[2048]{0}', space=vmem, size = 0x2000, scoped, tag = 'scoped memory for siamese_forward.2']
  #allocation13 [shape = 'u32[2048]{0}', space=vmem, size = 0x2000, scoped, tag = 'scoped memory for siamese_forward.2']
  #allocation14 [shape = 'u32[2048]{0}', space=vmem, size = 0x2000, scoped, tag = 'scoped memory for siamese_forward.2']
  #allocation15 [shape = 'u32[2048]{0}', space=vmem, size = 0x2000, scoped, tag = 'scoped memory for siamese_forward.2']
  #allocation16 [shape = 'u32[2048]{0}', space=vmem, size = 0x2000, scoped, tag = 'scoped memory for siamese_forward.2']
  %s0 = inlined_call_operand.hbm [shape: bf16[4,128,128], index: 0, kind: input, shape index: {}]
  %s1 = inlined_call_operand.hbm [shape: bf16[2,128,256], index: 1, kind: input, shape index: {}]
  %s2 = inlined_call_operand.hbm [shape: bf16[2,256,128], index: 2, kind: input, shape index: {}]
  %s3 = inlined_call_operand.vmem [shape: f32[2,6,128], index: 3, kind: input, shape index: {}]
  %s4 = inlined_call_operand.vmem [shape: f32[2,1,256], index: 4, kind: input, shape index: {}]
  %s5 = inlined_call_operand.vmem [shape: f32[4,128], index: 5, kind: input, shape index: {}]
  %s6 = inlined_call_operand.vmem [shape: bf16[8,112], index: 6, kind: input, shape index: {}]
  %s7 = inlined_call_operand.<no memory space> [shape: bf16[], index: 7, kind: input, shape index: {}]
  %s8 = inlined_call_operand.vmem [shape: bf16[8,112], index: 8, kind: input, shape index: {}]
  %s9 = inlined_call_operand.<no memory space> [shape: s32[], index: 9, kind: input, shape index: {}]
  %s10 = inlined_call_operand.<no memory space> [shape: s32[], index: 10, kind: input, shape index: {}]
  %s11 = inlined_call_operand.vmem [shape: bf16[8,112], index: 11, kind: input, shape index: {}]
  %s12 = inlined_call_operand.<no memory space> [shape: bf16[], index: 12, kind: input, shape index: {}]
  %s13 = inlined_call_operand.vmem [shape: f32[32,128], index: 13, kind: output, shape index: {}]
  %s14 = sld [smem:[#allocation0]]
  $region58: #{siamese_forward.2} parent=0
    _
  %s16 = ssub.s32 1, %s14
  %s17 = scalar_select 0, %s16, %s14
  %v18 = vstv %s7
  %v19 = vunpack.i.l.bf16 %v18
  %v21 = vunpack.i.h.bf16 %v18
  %v23 = vstv %s7
  %v24 = vunpack.i.l.bf16 %v23
  %v26 = vunpack.i.h.bf16 %v23
  %v28 = vstv %s9
  %v29 = vstv %s10
  %v30 = vstv %s7
  %v31 = vunpack.i.l.bf16 %v30
  %v33 = vunpack.i.h.bf16 %v30
  %v35 = vstv %s12
  %v36 = vunpack.i.l.bf16 %v35
  %v38 = vunpack.i.h.bf16 %v35
  $region1: #{siamese_forward.2} parent=0
    #allocation17 [shape = 'u8[131072]{0}', space=vmem, size = 0x20000, scoped, tag = 'input window, operand 1, single buffered']
    #allocation18 [shape = 's32[1]{0}', space=sflag, size = 0x4, scoped, tag = 'scoped memory for siamese_forward.2']
    #allocation19 [shape = 'u8[131072]{0}', space=vmem, size = 0x20000, scoped, tag = 'input window, operand 2, single buffered']
    #allocation20 [shape = 's32[1]{0}', space=sflag, size = 0x4, scoped, tag = 'scoped memory for siamese_forward.2']
    #allocation21 [shape = 'u8[131072]{0}', space=vmem, size = 0x20000, scoped, tag = 'input window, operand 3, single buffered']
    #allocation22 [shape = 'u8[8192]{0}', space=vmem, size = 0x2000, dematerialized = true, scoped, tag = 'FusionAdapter Buffer %fusion.10 = bf16[32,128]{1,0:T(8,128)(2,1)} fusion(%param_6.23, %param_7.11, %param_8.7, %param_9.9, %param_10.10, %param_11.11, %param_12.5), kind=kLoop, calls=%fused_computation.10.clone.clone, metadata={op_name="jit(siamese_forward)/concatenate" stack_frame_id=7}']
    %40 = vsyncpa [#allocation18], 0
    %41 = vsyncpa [#allocation20], 0
    // Predicated region
    $region2: #{siamese_forward.2} parent=1 // pred_check
      _
    $region3: #{siamese_forward.2} parent=1 // pred_check_branch
      %43 = sbr.rel (0) target = $region5
    $region4: #{siamese_forward.2} parent=1 // pred_region
      %s45 = ssub.s32 1, 0
      %s46 = smul.u32 4, %s45
      %p47 = scmp.lt.s32.totalorder 0, 0
      %s48 = scalar_select %p47, 0, 0
      %s49 = smul.addr %s48, 4
      %s50 = scalar_lea.vmem %s6, %s49
      %s52 = ssub.s32 1, 0
      %s53 = smul.u32 4, %s52
    $region5: #{siamese_forward.2} parent=1 // pred_fallthru
      _
    // Predicated region
    $region6: #{siamese_forward.2} parent=1 // pred_check
      _
    $region7: #{siamese_forward.2} parent=1 // pred_check_branch
      %55 = sbr.rel (0) target = $region9
    $region8: #{siamese_forward.2} parent=1 // pred_region
      %s57 = ssub.s32 1, 0
      %s58 = smul.u32 4, %s57
      %p59 = scmp.lt.s32.totalorder 0, 0
      %s60 = scalar_select %p59, 0, 0
      %s61 = smul.addr %s60, 4
      %s62 = scalar_lea.vmem %s8, %s61
      %s64 = ssub.s32 1, 0
      %s65 = smul.u32 4, %s64
    $region9: #{siamese_forward.2} parent=1 // pred_fallthru
      _
    // Predicated region
    $region10: #{siamese_forward.2} parent=1 // pred_check
      _
    $region11: #{siamese_forward.2} parent=1 // pred_check_branch
      %67 = sbr.rel (0) target = $region13
    $region12: #{siamese_forward.2} parent=1 // pred_region
      _
    $region13: #{siamese_forward.2} parent=1 // pred_fallthru
      _
    // Predicated region
    $region14: #{siamese_forward.2} parent=1 // pred_check
      _
    $region15: #{siamese_forward.2} parent=1 // pred_check_branch
      %69 = sbr.rel (0) target = $region17
    $region16: #{siamese_forward.2} parent=1 // pred_region
      %71 = vsyncadd [#allocation18], 0
      %s72 = sshll.u32 %s0, 4
      %s73 = int_to_ptr.hbm [resolvable:$true] %s72
      %s74 = sshll.u32 [#allocation17], 4
      %s75 = int_to_ptr.vmem [resolvable:$true] %s74
      %80 = dma.hbm_to_vmem [thread:$0]  %s73, 4096, %s75, [#allocation18], 64, 64, 4
    $region17: #{siamese_forward.2} parent=1 // pred_fallthru
      _
    // Predicated region
    $region18: #{siamese_forward.2} parent=1 // pred_check
      _
    $region19: #{siamese_forward.2} parent=1 // pred_check_branch
      %82 = sbr.rel (0) target = $region21
    $region20: #{siamese_forward.2} parent=1 // pred_region
      %84 = vsyncadd [#allocation20], 0
      %s85 = sshll.u32 %s1, 4
      %s86 = int_to_ptr.hbm [resolvable:$true] %s85
      %s87 = sshll.u32 [#allocation19], 4
      %s88 = int_to_ptr.vmem [resolvable:$true] %s87
      %93 = dma.hbm_to_vmem [thread:$0]  %s86, 4096, %s88, [#allocation20], 128, 128, 8
    $region21: #{siamese_forward.2} parent=1 // pred_fallthru
      _
    // Predicated region
    $region22: #{siamese_forward.2} parent=1 // pred_check
      _
    $region23: #{siamese_forward.2} parent=1 // pred_check_branch
      %95 = sbr.rel (0) target = $region25
    $region24: #{siamese_forward.2} parent=1 // pred_region
      %97 = vsyncadd [#allocation20], 0
      %s98 = sshll.u32 %s2, 4
      %s99 = int_to_ptr.hbm [resolvable:$true] %s98
      %s100 = sshll.u32 [#allocation21], 4
      %s101 = int_to_ptr.vmem [resolvable:$true] %s100
      %106 = dma.hbm_to_vmem [thread:$0]  %s99, 4096, %s101, [#allocation20], 64, 64, 4
    $region25: #{siamese_forward.2} parent=1 // pred_fallthru
      _
    // Predicated region
    $region26: #{siamese_forward.2} parent=1 // pred_check
      _
    $region27: #{siamese_forward.2} parent=1 // pred_check_branch
      %108 = sbr.rel (0) target = $region29
    $region28: #{siamese_forward.2} parent=1 // pred_region
      _
    $region29: #{siamese_forward.2} parent=1 // pred_fallthru
      _
    // Predicated region
    $region30: #{siamese_forward.2} parent=1 // pred_check
      _
    $region31: #{siamese_forward.2} parent=1 // pred_check_branch
      %110 = sbr.rel (0) target = $region33
    $region32: #{siamese_forward.2} parent=1 // pred_region
      _
    $region33: #{siamese_forward.2} parent=1 // pred_fallthru
      _
    // Predicated region
    $region34: #{siamese_forward.2} parent=1 // pred_check
      _
    $region35: #{siamese_forward.2} parent=1 // pred_check_branch
      %112 = sbr.rel (0) target = $region37
    $region36: #{siamese_forward.2} parent=1 // pred_region
      _
    $region37: #{siamese_forward.2} parent=1 // pred_fallthru
      _
    // Predicated region
    $region38: #{siamese_forward.2} parent=1 // pred_check
      _
    $region39: #{siamese_forward.2} parent=1 // pred_check_branch
      %114 = sbr.rel (0) target = $region41
    $region40: #{siamese_forward.2} parent=1 // pred_region
      %116 = dma.done [#allocation18], 4096
    $region41: #{siamese_forward.2} parent=1 // pred_fallthru
      _
    // Predicated region
    $region42: #{siamese_forward.2} parent=1 // pred_check
      _
    $region43: #{siamese_forward.2} parent=1 // pred_check_branch
      %118 = sbr.rel (0) target = $region45
    $region44: #{siamese_forward.2} parent=1 // pred_region
      %120 = dma.done [#allocation20], 4096
    $region45: #{siamese_forward.2} parent=1 // pred_fallthru
      _
    // Predicated region
    $region46: #{siamese_forward.2} parent=1 // pred_check
      _
    $region47: #{siamese_forward.2} parent=1 // pred_check_branch
      %122 = sbr.rel (0) target = $region49
    $region48: #{siamese_forward.2} parent=1 // pred_region
      %124 = dma.done [#allocation20], 4096
    $region49: #{siamese_forward.2} parent=1 // pred_fallthru
      _
    %s126 = ssub.s32 1, 0
    %s127 = smul.u32 4, %s126
    %p128 = scmp.lt.s32.totalorder 0, 0
    %s129 = scalar_select %p128, 0, 0
    %s130 = smul.addr %s129, 4
    %s131 = scalar_lea.vmem %s6, %s130
    %s133 = ssub.s32 1, 0
    %s134 = smul.u32 4, %s133
    %p135 = scmp.lt.s32.totalorder 0, 0
    %s136 = scalar_select %p135, 0, 0
    %s137 = smul.addr %s136, 4
    %s138 = scalar_lea.vmem %s8, %s137
    %s140 = ssub.s32 1, 0
    %s141 = smul.u32 4, %s140
    %p142 = scmp.lt.s32.totalorder 0, 0
    %s143 = scalar_select %p142, 0, 0
    %s144 = smul.addr %s143, 4
    %s145 = scalar_lea.vmem %s6, %s144
    %s147 = ssub.s32 1, 0
    %s148 = smul.u32 4, %s147
    %s150 = ssub.s32 1, 0
    %s151 = smul.u32 4, %s150
    %p152 = scmp.lt.s32.totalorder 0, 0
    %s153 = scalar_select %p152, 0, 0
    %s154 = smul.addr %s153, 4
    %s155 = scalar_lea.vmem %s8, %s154
    %s157 = ssub.s32 1, 0
    %s158 = smul.u32 4, %s157
    %s159 = ssub.s32 0, 0
    %p160 = scmp.lt.s32.totalorder %s159, 0
    %s161 = scalar_select %p160, 0, 255
    %s162 = sshrl.u32 %s161, 1
    %s163 = sor.u32 %s161, %s162
    %s164 = sand.u32 %s163, 85
    %s165 = sshrl.u32 %s164, 1
    %s166 = sor.u32 %s164, %s165
    %s167 = sand.u32 51, %s166
    %s168 = sshrl.u32 %s167, 2
    %s169 = sor.u32 %s167, %s168
    %s170 = sand.u32 15, %s169
    %v171 = vld [vmem:[%s145] sm:%s170]
    %v172 = vunpack.c.l.bf16 %v171
    %v173 = vunpack.c.h.bf16 %v171
    %s174 = ssub.s32 0, 0
    %p175 = scmp.lt.s32.totalorder %s174, 0
    %s176 = scalar_select %p175, 0, 255
    %s177 = sshrl.u32 %s176, 1
    %s178 = sor.u32 %s176, %s177
    %s179 = sand.u32 %s178, 85
    %s180 = sshrl.u32 %s179, 1
    %s181 = sor.u32 %s179, %s180
    %s182 = sand.u32 51, %s181
    %s183 = sshrl.u32 %s182, 2
    %s184 = sor.u32 %s182, %s183
    %s185 = sand.u32 15, %s184
    %v186 = vld [vmem:[%s155] sm:%s185]
    %v187 = vunpack.c.l.bf16 %v186
    %v188 = vunpack.c.h.bf16 %v186
    %s190 = sor.u32 255, 127
    %s191 = sand.u32 %s190, 85
    %s192 = sshrl.u32 %s191, 1
    %s193 = sor.u32 %s191, %s192
    %s194 = sand.u32 51, %s193
    %s195 = sshrl.u32 %s194, 2
    %s196 = sor.u32 %s194, %s195
    %s197 = sand.u32 15, %s196
    %v198 = vld [vmem:[%s11] sm:%s197]
    %v199 = vunpack.c.l.bf16 %v198
    %v200 = vunpack.c.h.bf16 %v198
    %v201 = vlaneseq
    %v202 = vand.u32 %v201, 127
    %vm204 = vcmp.lt.s32.totalorder %v202, 112
    %v205 = vsel %vm204, %v199, %v31
    %v206 = vlaneseq
    %v207 = vshrl.u32 %v206, 7
    %210 = xla_tuple %v207, %v29
    %211 = xla_tuple %210
    %vm212 = vcmp.lt.s32.totalorder %v207, %v29
    %v213 = vsel %vm212, 1, 0
    %214 = xla_tuple %v213
    %v215 = vlaneseq
    %v216 = vand.u32 %v215, 127
    %219 = xla_tuple %v216, %v28
    %220 = xla_tuple %219
    %vm221 = vcmp.lt.s32.totalorder %v216, %v28
    %v222 = vsel %vm221, 1, 0
    %223 = xla_tuple %v222
    %v224 = vand.u32 %v213, %v222
    %225 = xla_tuple %v213, %v205, %v36
    %226 = xla_tuple %225
    %v227 = vsel %vm212, %v205, %v36
    %228 = xla_tuple %v227
    %229 = xla_tuple %v224, %v227, %v36
    %230 = xla_tuple %229
    %vm231 = vcmp.ne.s32.totalorder %v224, 0
    %v232 = vsel %vm231, %v227, %v36
    %233 = xla_tuple %v232
    %234 = xla_tuple %v213, %v24, %v36
    %235 = xla_tuple %234
    %v236 = vsel %vm212, %v24, %v36
    %237 = xla_tuple %v236
    %238 = xla_tuple %v224, %v236, %v36
    %239 = xla_tuple %238
    %vm240 = vcmp.ne.s32.totalorder %v224, 0
    %v241 = vsel %vm240, %v236, %v36
    %242 = xla_tuple %v241
    %243 = xla_tuple %v232, %v241
    %244 = xla_tuple %243
    %v245 = vmax.f32 %v232, %v241
    %246 = xla_tuple %v245
    %247 = xla_tuple %v213, %v19, %v36
    %248 = xla_tuple %247
    %v249 = vsel %vm212, %v19, %v36
    %250 = xla_tuple %v249
    %251 = xla_tuple %v224, %v249, %v36
    %252 = xla_tuple %251
    %vm253 = vcmp.ne.s32.totalorder %v224, 0
    %v254 = vsel %vm253, %v249, %v36
    %255 = xla_tuple %v254
    %256 = xla_tuple %v245, %v254
    %257 = xla_tuple %256
    %v258 = vmax.f32 %v245, %v254
    %259 = xla_tuple %v258
    %v260 = vpack.c.bf16 0.0, %v258
    %s262 = ssub.s32 16, 1
    %263 = vst [vmem:[#allocation22] sm:%s262] %v260
    %v264 = vlaneseq
    %v265 = vand.u32 %v264, 127
    %vm267 = vcmp.lt.s32.totalorder %v265, 112
    %v268 = vsel %vm267, %v187, %v24
    %v269 = vlaneseq
    %v270 = vshrl.u32 %v269, 7
    %v272 = vadd.s32 %v270, 8
    %273 = xla_tuple %v272, %v29
    %274 = xla_tuple %273
    %vm275 = vcmp.lt.s32.totalorder %v272, %v29
    %v276 = vsel %vm275, 1, 0
    %277 = xla_tuple %v276
    %v278 = vlaneseq
    %v279 = vand.u32 %v278, 127
    %282 = xla_tuple %v279, %v28
    %283 = xla_tuple %282
    %vm284 = vcmp.lt.s32.totalorder %v279, %v28
    %v285 = vsel %vm284, 1, 0
    %286 = xla_tuple %v285
    %v287 = vand.u32 %v276, %v285
    %288 = xla_tuple %v276, %v31, %v36
    %289 = xla_tuple %288
    %v290 = vsel %vm275, %v31, %v36
    %291 = xla_tuple %v290
    %292 = xla_tuple %v287, %v290, %v36
    %293 = xla_tuple %292
    %vm294 = vcmp.ne.s32.totalorder %v287, 0
    %v295 = vsel %vm294, %v290, %v36
    %296 = xla_tuple %v295
    %297 = xla_tuple %v276, %v268, %v36
    %298 = xla_tuple %297
    %v299 = vsel %vm275, %v268, %v36
    %300 = xla_tuple %v299
    %301 = xla_tuple %v287, %v299, %v36
    %302 = xla_tuple %301
    %vm303 = vcmp.ne.s32.totalorder %v287, 0
    %v304 = vsel %vm303, %v299, %v36
    %305 = xla_tuple %v304
    %306 = xla_tuple %v295, %v304
    %307 = xla_tuple %306
    %v308 = vmax.f32 %v295, %v304
    %309 = xla_tuple %v308
    %310 = xla_tuple %v276, %v19, %v36
    %311 = xla_tuple %310
    %v312 = vsel %vm275, %v19, %v36
    %313 = xla_tuple %v312
    %314 = xla_tuple %v287, %v312, %v36
    %315 = xla_tuple %314
    %vm316 = vcmp.ne.s32.totalorder %v287, 0
    %v317 = vsel %vm316, %v312, %v36
    %318 = xla_tuple %v317
    %319 = xla_tuple %v308, %v317
    %320 = xla_tuple %319
    %v321 = vmax.f32 %v308, %v317
    %322 = xla_tuple %v321
    %s323 = scalar_lea.vmem [#allocation22], 4
    %v324 = vpack.c.bf16 0.0, %v321
    %s326 = ssub.s32 16, 1
    %327 = vst [vmem:[%s323] sm:%s326] %v324
    %v328 = vlaneseq
    %v329 = vand.u32 %v328, 127
    %vm331 = vcmp.lt.s32.totalorder %v329, 112
    %v332 = vsel %vm331, %v172, %v19
    %v333 = vlaneseq
    %v334 = vshrl.u32 %v333, 7
    %v336 = vadd.s32 %v334, 16
    %337 = xla_tuple %v336, %v29
    %338 = xla_tuple %337
    %vm339 = vcmp.lt.s32.totalorder %v336, %v29
    %v340 = vsel %vm339, 1, 0
    %341 = xla_tuple %v340
    %v342 = vlaneseq
    %v343 = vand.u32 %v342, 127
    %346 = xla_tuple %v343, %v28
    %347 = xla_tuple %346
    %vm348 = vcmp.lt.s32.totalorder %v343, %v28
    %v349 = vsel %vm348, 1, 0
    %350 = xla_tuple %v349
    %v351 = vand.u32 %v340, %v349
    %352 = xla_tuple %v340, %v31, %v36
    %353 = xla_tuple %352
    %v354 = vsel %vm339, %v31, %v36
    %355 = xla_tuple %v354
    %356 = xla_tuple %v351, %v354, %v36
    %357 = xla_tuple %356
    %vm358 = vcmp.ne.s32.totalorder %v351, 0
    %v359 = vsel %vm358, %v354, %v36
    %360 = xla_tuple %v359
    %361 = xla_tuple %v340, %v24, %v36
    %362 = xla_tuple %361
    %v363 = vsel %vm339, %v24, %v36
    %364 = xla_tuple %v363
    %365 = xla_tuple %v351, %v363, %v36
    %366 = xla_tuple %365
    %vm367 = vcmp.ne.s32.totalorder %v351, 0
    %v368 = vsel %vm367, %v363, %v36
    %369 = xla_tuple %v368
    %370 = xla_tuple %v359, %v368
    %371 = xla_tuple %370
    %v372 = vmax.f32 %v359, %v368
    %373 = xla_tuple %v372
    %374 = xla_tuple %v340, %v332, %v36
    %375 = xla_tuple %374
    %v376 = vsel %vm339, %v332, %v36
    %377 = xla_tuple %v376
    %378 = xla_tuple %v351, %v376, %v36
    %379 = xla_tuple %378
    %vm380 = vcmp.ne.s32.totalorder %v351, 0
    %v381 = vsel %vm380, %v376, %v36
    %382 = xla_tuple %v381
    %383 = xla_tuple %v372, %v381
    %384 = xla_tuple %383
    %v385 = vmax.f32 %v372, %v381
    %386 = xla_tuple %v385
    %s387 = scalar_lea.vmem [#allocation22], 8
    %v388 = vpack.c.bf16 0.0, %v385
    %s390 = ssub.s32 16, 1
    %391 = vst [vmem:[%s387] sm:%s390] %v388
    %v392 = vlaneseq
    %v393 = vshrl.u32 %v392, 7
    %v395 = vadd.s32 %v393, 24
    %396 = xla_tuple %v395, %v29
    %397 = xla_tuple %396
    %vm398 = vcmp.lt.s32.totalorder %v395, %v29
    %v399 = vsel %vm398, 1, 0
    %400 = xla_tuple %v399
    %v401 = vlaneseq
    %v402 = vand.u32 %v401, 127
    %405 = xla_tuple %v402, %v28
    %406 = xla_tuple %405
    %vm407 = vcmp.lt.s32.totalorder %v402, %v28
    %v408 = vsel %vm407, 1, 0
    %409 = xla_tuple %v408
    %v410 = vand.u32 %v399, %v408
    %411 = xla_tuple %v399, %v31, %v36
    %412 = xla_tuple %411
    %v413 = vsel %vm398, %v31, %v36
    %414 = xla_tuple %v413
    %415 = xla_tuple %v410, %v413, %v36
    %416 = xla_tuple %415
    %vm417 = vcmp.ne.s32.totalorder %v410, 0
    %v418 = vsel %vm417, %v413, %v36
    %419 = xla_tuple %v418
    %420 = xla_tuple %v399, %v24, %v36
    %421 = xla_tuple %420
    %v422 = vsel %vm398, %v24, %v36
    %423 = xla_tuple %v422
    %424 = xla_tuple %v410, %v422, %v36
    %425 = xla_tuple %424
    %vm426 = vcmp.ne.s32.totalorder %v410, 0
    %v427 = vsel %vm426, %v422, %v36
    %428 = xla_tuple %v427
    %429 = xla_tuple %v418, %v427
    %430 = xla_tuple %429
    %v431 = vmax.f32 %v418, %v427
    %432 = xla_tuple %v431
    %433 = xla_tuple %v399, %v19, %v36
    %434 = xla_tuple %433
    %v435 = vsel %vm398, %v19, %v36
    %436 = xla_tuple %v435
    %437 = xla_tuple %v410, %v435, %v36
    %438 = xla_tuple %437
    %vm439 = vcmp.ne.s32.totalorder %v410, 0
    %v440 = vsel %vm439, %v435, %v36
    %441 = xla_tuple %v440
    %442 = xla_tuple %v431, %v440
    %443 = xla_tuple %442
    %v444 = vmax.f32 %v431, %v440
    %445 = xla_tuple %v444
    %s446 = scalar_lea.vmem [#allocation22], 12
    %v447 = vpack.c.bf16 0.0, %v444
    %s449 = ssub.s32 16, 1
    %450 = vst [vmem:[%s446] sm:%s449] %v447
    %v451 = vld [vmem:[#allocation22] sm:$0xf]
    %v452 = vld [vmem:[#allocation22 + $0x4] sm:$0xf]
    %v453 = vld [vmem:[#allocation22 + $0x8] sm:$0xf]
    %v454 = vld [vmem:[#allocation22 + $0xc] sm:$0xf]
    %v455 = vld [vmem:[#allocation17] sm:$0xf]
    %v456 = vld [vmem:[#allocation17 + $0x4] sm:$0xf]
    %v457 = vld [vmem:[#allocation17 + $0x8] sm:$0xf]
    %v458 = vld [vmem:[#allocation17 + $0xc] sm:$0xf]
    %v459 = vld [vmem:[#allocation17 + $0x10] sm:$0xf]
    %v460 = vld [vmem:[#allocation17 + $0x14] sm:$0xf]
    %v461 = vld [vmem:[#allocation17 + $0x18] sm:$0xf]
    %v462 = vld [vmem:[#allocation17 + $0x1c] sm:$0xf]
    %v463 = vld [vmem:[#allocation17 + $0x20] sm:$0xf]
    %v464 = vld [vmem:[#allocation17 + $0x24] sm:$0xf]
    %v465 = vld [vmem:[#allocation17 + $0x28] sm:$0xf]
    %v466 = vld [vmem:[#allocation17 + $0x2c] sm:$0xf]
    %v467 = vld [vmem:[#allocation17 + $0x30] sm:$0xf]
    %v468 = vld [vmem:[#allocation17 + $0x34] sm:$0xf]
    %v469 = vld [vmem:[#allocation17 + $0x38] sm:$0xf]
    %v470 = vld [vmem:[#allocation17 + $0x3c] sm:$0xf]
    %v471 = vld [vmem:[%s5] sm:$0x1]
    %v472 = vperm.slane %v471, 0
    %v477 = vunpack.c.l.b16 %v451
    %v478 = vunpack.c.l.b16 %v452
    %v479 = vunpack.c.l.b16 %v453
    %v480 = vunpack.c.l.b16 %v454
    %v481 = vpack.c.b16 %v478, %v477
    %v482 = vpack.c.b16 %v480, %v479
    %v501 = vunpack.c.l.b16 %v455
    %v502 = vunpack.c.l.b16 %v456
    %v503 = vunpack.c.l.b16 %v457
    %v504 = vunpack.c.l.b16 %v458
    %v505 = vunpack.c.l.b16 %v459
    %v506 = vunpack.c.l.b16 %v460
    %v507 = vunpack.c.l.b16 %v461
    %v508 = vunpack.c.l.b16 %v462
    %v509 = vunpack.c.l.b16 %v463
    %v510 = vunpack.c.l.b16 %v464
    %v511 = vunpack.c.l.b16 %v465
    %v512 = vunpack.c.l.b16 %v466
    %v513 = vunpack.c.l.b16 %v467
    %v514 = vunpack.c.l.b16 %v468
    %v515 = vunpack.c.l.b16 %v469
    %v516 = vunpack.c.l.b16 %v470
    %v517 = vpack.c.b16 %v502, %v501
    %v518 = vpack.c.b16 %v504, %v503
    %v519 = vpack.c.b16 %v506, %v505
    %v520 = vpack.c.b16 %v508, %v507
    %v521 = vpack.c.b16 %v510, %v509
    %v522 = vpack.c.b16 %v512, %v511
    %v523 = vpack.c.b16 %v514, %v513
    %v524 = vpack.c.b16 %v516, %v515
    %533 = vmatpush.bf16.msra.mxu0 %v524
    %534 = vmatpush.bf16.msra.mxu0 %v523
    %535 = vmatpush.bf16.msra.mxu0 %v522
    %536 = vmatpush.bf16.msra.mxu0 %v521
    %537 = vmatpush.bf16.msra.mxu0 %v520
    %538 = vmatpush.bf16.msra.mxu0 %v519
    %539 = vmatpush.bf16.msra.mxu0 %v518
    %540 = vmatpush.bf16.msra.mxu0 %v517
    %541 = vmatmul.bf16.gmra.mxu0 %v481
    %v542 = vpop.f32.mrf.mxu0
    %v543 = vadd.f32 %v472, %v542
    %v544 = vpop.f32.mrf.mxu0
    %v545 = vadd.f32 %v472, %v544
    %546 = vmatmul.bf16.gmra.mxu0 %v482
    %v547 = vpop.f32.mrf.mxu0
    %v548 = vadd.f32 %v472, %v547
    %v549 = vpop.f32.mrf.mxu0
    %v550 = vadd.f32 %v472, %v549
    %551 = vdwg.mxu0
    %s552 = scalar_lea.vmem [#allocation17], 64
    %v553 = vld [vmem:[%s552] sm:$0xf]
    %v554 = vld [vmem:[%s552 + $0x4] sm:$0xf]
    %v555 = vld [vmem:[%s552 + $0x8] sm:$0xf]
    %v556 = vld [vmem:[%s552 + $0xc] sm:$0xf]
    %v557 = vld [vmem:[%s552 + $0x10] sm:$0xf]
    %v558 = vld [vmem:[%s552 + $0x14] sm:$0xf]
    %v559 = vld [vmem:[%s552 + $0x18] sm:$0xf]
    %v560 = vld [vmem:[%s552 + $0x1c] sm:$0xf]
    %v561 = vld [vmem:[%s552 + $0x20] sm:$0xf]
    %v562 = vld [vmem:[%s552 + $0x24] sm:$0xf]
    %v563 = vld [vmem:[%s552 + $0x28] sm:$0xf]
    %v564 = vld [vmem:[%s552 + $0x2c] sm:$0xf]
    %v565 = vld [vmem:[%s552 + $0x30] sm:$0xf]
    %v566 = vld [vmem:[%s552 + $0x34] sm:$0xf]
    %v567 = vld [vmem:[%s552 + $0x38] sm:$0xf]
    %v568 = vld [vmem:[%s552 + $0x3c] sm:$0xf]
    %v569 = vld [vmem:[%s3] sm:$0x1]
    %v570 = vpack.c.bf16 %v545, %v543
    %v571 = vpack.c.bf16 %v550, %v548
    %v572 = vperm.slane %v569, 0
    %v589 = vunpack.c.l.b16 %v553
    %v590 = vunpack.c.l.b16 %v554
    %v591 = vunpack.c.l.b16 %v555
    %v592 = vunpack.c.l.b16 %v556
    %v593 = vunpack.c.l.b16 %v557
    %v594 = vunpack.c.l.b16 %v558
    %v595 = vunpack.c.l.b16 %v559
    %v596 = vunpack.c.l.b16 %v560
    %v597 = vunpack.c.l.b16 %v561
    %v598 = vunpack.c.l.b16 %v562
    %v599 = vunpack.c.l.b16 %v563
    %v600 = vunpack.c.l.b16 %v564
    %v601 = vunpack.c.l.b16 %v565
    %v602 = vunpack.c.l.b16 %v566
    %v603 = vunpack.c.l.b16 %v567
    %v604 = vunpack.c.l.b16 %v568
    %v605 = vpack.c.b16 %v590, %v589
    %v606 = vpack.c.b16 %v592, %v591
    %v607 = vpack.c.b16 %v594, %v593
    %v608 = vpack.c.b16 %v596, %v595
    %v609 = vpack.c.b16 %v598, %v597
    %v610 = vpack.c.b16 %v600, %v599
    %v611 = vpack.c.b16 %v602, %v601
    %v612 = vpack.c.b16 %v604, %v603
    %621 = vmatpush.bf16.msra.mxu0 %v612
    %622 = vmatpush.bf16.msra.mxu0 %v611
    %623 = vmatpush.bf16.msra.mxu0 %v610
    %624 = vmatpush.bf16.msra.mxu0 %v609
    %625 = vmatpush.bf16.msra.mxu0 %v608
    %626 = vmatpush.bf16.msra.mxu0 %v607
    %627 = vmatpush.bf16.msra.mxu0 %v606
    %628 = vmatpush.bf16.msra.mxu0 %v605
    %629 = vmatmul.bf16.gmra.mxu0 %v570
    %v630 = vpop.f32.mrf.mxu0
    %v631 = vadd.f32 %v572, %v630
    %v632 = vpop.f32.mrf.mxu0
    %v633 = vadd.f32 %v572, %v632
    %634 = vmatmul.bf16.gmra.mxu0 %v571
    %v635 = vpop.f32.mrf.mxu0
    %v636 = vadd.f32 %v572, %v635
    %v637 = vpop.f32.mrf.mxu0
    %v638 = vadd.f32 %v572, %v637
    %639 = vdwg.mxu0
    %v640 = vadd.f32 %v543, %v631
    %v641 = vadd.f32 %v545, %v633
    %v642 = vadd.f32 %v548, %v636
    %v643 = vadd.f32 %v550, %v638
    %v644 = vld [vmem:[%s3 + $0x2] sm:$0x1]
    %v645 = vld [vmem:[%s3 + $0x3] sm:$0x1]
    %646 = vadd.xlane.f32.xlu0 %v640
    %v647 = vpop.xlane.xlu0 %646
    %648 = vadd.xlane.f32.xlu0 %v641
    %v649 = vpop.xlane.xlu0 %648
    %650 = vadd.xlane.f32.xlu0 %v642
    %v651 = vpop.xlane.xlu0 %650
    %652 = vadd.xlane.f32.xlu0 %v643
    %v653 = vpop.xlane.xlu0 %652
    %v654 = vmul.f32 %v640, %v640
    %v655 = vmul.f32 %v641, %v641
    %v656 = vmul.f32 %v642, %v642
    %v657 = vmul.f32 %v643, %v643
    %658 = vadd.xlane.f32.xlu0 %v654
    %v659 = vpop.xlane.xlu0 %658
    %660 = vadd.xlane.f32.xlu0 %v655
    %v661 = vpop.xlane.xlu0 %660
    %662 = vadd.xlane.f32.xlu0 %v656
    %v663 = vpop.xlane.xlu0 %662
    %664 = vadd.xlane.f32.xlu0 %v657
    %v665 = vpop.xlane.xlu0 %664
    %v666 = vmul.f32 %v647, 0.0078125
    %v667 = vmul.f32 %v649, 0.0078125
    %v668 = vmul.f32 %v651, 0.0078125
    %v669 = vmul.f32 %v653, 0.0078125
    %v670 = vmul.f32 %v659, 0.0078125
    %v671 = vmul.f32 %v661, 0.0078125
    %v672 = vmul.f32 %v663, 0.0078125
    %v673 = vmul.f32 %v665, 0.0078125
    %v674 = vmul.f32 %v666, %v666
    %v675 = vmul.f32 %v667, %v667
    %v676 = vmul.f32 %v668, %v668
    %v677 = vmul.f32 %v669, %v669
    %v678 = vsub.f32 %v670, %v674
    %v679 = vsub.f32 %v671, %v675
    %v680 = vsub.f32 %v672, %v676
    %v681 = vsub.f32 %v673, %v677
    %v682 = vsub.f32 %v640, %v666
    %v683 = vsub.f32 %v641, %v667
    %v684 = vsub.f32 %v642, %v668
    %v685 = vsub.f32 %v643, %v669
    %v686 = vadd.f32 %v678, 1e-05
    %v687 = vadd.f32 %v679, 1e-05
    %v688 = vadd.f32 %v680, 1e-05
    %v689 = vadd.f32 %v681, 1e-05
    %v690 = vrsqrt.pop %v686
    %v691 = vmul.f32 %v690, %v686
    %v692 = vmul.f32 %v691, %v690
    %v693 = vmul.f32 0.5, %v692
    %v694 = vsub.f32 1.5, %v693
    %v695 = vmul.f32 %v690, %v694
    %vm696 = vweird.f32 %v686
    %vm697 = vweird.f32 %v690
    %vm698 = vmor %vm696, %vm697
    %v699 = vsel %vm698, %v690, %v695
    %v700 = vrsqrt.pop %v687
    %v701 = vmul.f32 %v700, %v687
    %v702 = vmul.f32 %v701, %v700
    %v703 = vmul.f32 0.5, %v702
    %v704 = vsub.f32 1.5, %v703
    %v705 = vmul.f32 %v700, %v704
    %vm706 = vweird.f32 %v687
    %vm707 = vweird.f32 %v700
    %vm708 = vmor %vm706, %vm707
    %v709 = vsel %vm708, %v700, %v705
    %v710 = vrsqrt.pop %v688
    %v711 = vmul.f32 %v710, %v688
    %v712 = vmul.f32 %v711, %v710
    %v713 = vmul.f32 0.5, %v712
    %v714 = vsub.f32 1.5, %v713
    %v715 = vmul.f32 %v710, %v714
    %vm716 = vweird.f32 %v688
    %vm717 = vweird.f32 %v710
    %vm718 = vmor %vm716, %vm717
    %v719 = vsel %vm718, %v710, %v715
    %v720 = vrsqrt.pop %v689
    %v721 = vmul.f32 %v720, %v689
    %v722 = vmul.f32 %v721, %v720
    %v723 = vmul.f32 0.5, %v722
    %v724 = vsub.f32 1.5, %v723
    %v725 = vmul.f32 %v720, %v724
    %vm726 = vweird.f32 %v689
    %vm727 = vweird.f32 %v720
    %vm728 = vmor %vm726, %vm727
    %v729 = vsel %vm728, %v720, %v725
    %v730 = vmul.f32 %v682, %v699
    %v731 = vmul.f32 %v683, %v709
    %v732 = vmul.f32 %v684, %v719
    %v733 = vmul.f32 %v685, %v729
    %v734 = vperm.slane %v644, 0
    %v735 = vmul.f32 %v730, %v734
    %v736 = vmul.f32 %v731, %v734
    %v737 = vmul.f32 %v732, %v734
    %v738 = vmul.f32 %v733, %v734
    %v739 = vperm.slane %v645, 0
    %v740 = vadd.f32 %v735, %v739
    %v741 = vadd.f32 %v736, %v739
    %v742 = vadd.f32 %v737, %v739
    %v743 = vadd.f32 %v738, %v739
    %v744 = vld [vmem:[#allocation19] sm:$0xff]
    %v745 = vld [vmem:[#allocation19 + $0x8] sm:$0xff]
    %v746 = vld [vmem:[#allocation19 + $0x10] sm:$0xff]
    %v747 = vld [vmem:[#allocation19 + $0x18] sm:$0xff]
    %v748 = vld [vmem:[#allocation19 + $0x20] sm:$0xff]
    %v749 = vld [vmem:[#allocation19 + $0x28] sm:$0xff]
    %v750 = vld [vmem:[#allocation19 + $0x30] sm:$0xff]
    %v751 = vld [vmem:[#allocation19 + $0x38] sm:$0xff]
    %v752 = vld [vmem:[#allocation19 + $0x40] sm:$0xff]
    %v753 = vld [vmem:[#allocation19 + $0x48] sm:$0xff]
    %v754 = vld [vmem:[#allocation19 + $0x50] sm:$0xff]
    %v755 = vld [vmem:[#allocation19 + $0x58] sm:$0xff]
    %v756 = vld [vmem:[#allocation19 + $0x60] sm:$0xff]
    %v757 = vld [vmem:[#allocation19 + $0x68] sm:$0xff]
    %v758 = vld [vmem:[#allocation19 + $0x70] sm:$0xff]
    %v759 = vld [vmem:[#allocation19 + $0x78] sm:$0xff]
    %v760 = vld [vmem:[%s4] sm:$0x3]
    %v761 = vpack.c.bf16 %v741, %v740
    %v762 = vpack.c.bf16 %v743, %v742
    %v764 = vperm.slane %v760, 0
    %v765 = vperm.slane %v760, 1
    %v784 = vunpack.c.l.b16 %v744
    %v785 = vunpack.c.h.b16 %v744
    %v786 = vunpack.c.l.b16 %v745
    %v787 = vunpack.c.h.b16 %v745
    %v788 = vunpack.c.l.b16 %v746
    %v789 = vunpack.c.h.b16 %v746
    %v790 = vunpack.c.l.b16 %v747
    %v791 = vunpack.c.h.b16 %v747
    %v792 = vunpack.c.l.b16 %v748
    %v793 = vunpack.c.h.b16 %v748
    %v794 = vunpack.c.l.b16 %v749
    %v795 = vunpack.c.h.b16 %v749
    %v796 = vunpack.c.l.b16 %v750
    %v797 = vunpack.c.h.b16 %v750
    %v798 = vunpack.c.l.b16 %v751
    %v799 = vunpack.c.h.b16 %v751
    %v800 = vunpack.c.l.b16 %v752
    %v801 = vunpack.c.h.b16 %v752
    %v802 = vunpack.c.l.b16 %v753
    %v803 = vunpack.c.h.b16 %v753
    %v804 = vunpack.c.l.b16 %v754
    %v805 = vunpack.c.h.b16 %v754
    %v806 = vunpack.c.l.b16 %v755
    %v807 = vunpack.c.h.b16 %v755
    %v808 = vunpack.c.l.b16 %v756
    %v809 = vunpack.c.h.b16 %v756
    %v810 = vunpack.c.l.b16 %v757
    %v811 = vunpack.c.h.b16 %v757
    %v812 = vunpack.c.l.b16 %v758
    %v813 = vunpack.c.h.b16 %v758
    %v814 = vunpack.c.l.b16 %v759
    %v815 = vunpack.c.h.b16 %v759
    %v816 = vpack.c.b16 %v786, %v784
    %v817 = vpack.c.b16 %v787, %v785
    %v818 = vpack.c.b16 %v790, %v788
    %v819 = vpack.c.b16 %v791, %v789
    %v820 = vpack.c.b16 %v794, %v792
    %v821 = vpack.c.b16 %v795, %v793
    %v822 = vpack.c.b16 %v798, %v796
    %v823 = vpack.c.b16 %v799, %v797
    %v824 = vpack.c.b16 %v802, %v800
    %v825 = vpack.c.b16 %v803, %v801
    %v826 = vpack.c.b16 %v806, %v804
    %v827 = vpack.c.b16 %v807, %v805
    %v828 = vpack.c.b16 %v810, %v808
    %v829 = vpack.c.b16 %v811, %v809
    %v830 = vpack.c.b16 %v814, %v812
    %v831 = vpack.c.b16 %v815, %v813
    %848 = vmatpush.bf16.msra.mxu0 %v830
    %849 = vmatpush.bf16.msra.mxu0 %v828
    %850 = vmatpush.bf16.msra.mxu0 %v826
    %851 = vmatpush.bf16.msra.mxu0 %v824
    %852 = vmatpush.bf16.msra.mxu0 %v822
    %853 = vmatpush.bf16.msra.mxu0 %v820
    %854 = vmatpush.bf16.msra.mxu0 %v818
    %855 = vmatpush.bf16.msra.mxu0 %v816
    %856 = vmatmul.bf16.gmra.mxu0 %v761
    %v857 = vpop.f32.mrf.mxu0
    %v858 = vadd.f32 %v764, %v857
    %v859 = vpop.f32.mrf.mxu0
    %v860 = vadd.f32 %v764, %v859
    %861 = vmatmul.bf16.gmra.mxu0 %v762
    %v862 = vpop.f32.mrf.mxu0
    %v863 = vadd.f32 %v764, %v862
    %v864 = vpop.f32.mrf.mxu0
    %v865 = vadd.f32 %v764, %v864
    %866 = vdwg.mxu0
    %867 = vmatpush.bf16.msra.mxu0 %v831
    %868 = vmatpush.bf16.msra.mxu0 %v829
    %869 = vmatpush.bf16.msra.mxu0 %v827
    %870 = vmatpush.bf16.msra.mxu0 %v825
    %871 = vmatpush.bf16.msra.mxu0 %v823
    %872 = vmatpush.bf16.msra.mxu0 %v821
    %873 = vmatpush.bf16.msra.mxu0 %v819
    %874 = vmatpush.bf16.msra.mxu0 %v817
    %875 = vmatmul.bf16.gmra.mxu0 %v761
    %v876 = vpop.f32.mrf.mxu0
    %v877 = vadd.f32 %v765, %v876
    %v878 = vpop.f32.mrf.mxu0
    %v879 = vadd.f32 %v765, %v878
    %880 = vmatmul.bf16.gmra.mxu0 %v762
    %v881 = vpop.f32.mrf.mxu0
    %v882 = vadd.f32 %v765, %v881
    %v883 = vpop.f32.mrf.mxu0
    %v884 = vadd.f32 %v765, %v883
    %885 = vdwg.mxu0
    %v886 = vmax.f32 %v858, 0.0
    %v887 = vmax.f32 %v877, 0.0
    %v888 = vmax.f32 %v860, 0.0
    %v889 = vmax.f32 %v879, 0.0
    %v890 = vmax.f32 %v863, 0.0
    %v891 = vmax.f32 %v882, 0.0
    %v892 = vmax.f32 %v865, 0.0
    %v893 = vmax.f32 %v884, 0.0
    %v894 = vld [vmem:[#allocation21] sm:$0xf]
    %v895 = vld [vmem:[#allocation21 + $0x4] sm:$0xf]
    %v896 = vld [vmem:[#allocation21 + $0x8] sm:$0xf]
    %v897 = vld [vmem:[#allocation21 + $0xc] sm:$0xf]
    %v898 = vld [vmem:[#allocation21 + $0x10] sm:$0xf]
    %v899 = vld [vmem:[#allocation21 + $0x14] sm:$0xf]
    %v900 = vld [vmem:[#allocation21 + $0x18] sm:$0xf]
    %v901 = vld [vmem:[#allocation21 + $0x1c] sm:$0xf]
    %v902 = vld [vmem:[#allocation21 + $0x20] sm:$0xf]
    %v903 = vld [vmem:[#allocation21 + $0x24] sm:$0xf]
    %v904 = vld [vmem:[#allocation21 + $0x28] sm:$0xf]
    %v905 = vld [vmem:[#allocation21 + $0x2c] sm:$0xf]
    %v906 = vld [vmem:[#allocation21 + $0x30] sm:$0xf]
    %v907 = vld [vmem:[#allocation21 + $0x34] sm:$0xf]
    %v908 = vld [vmem:[#allocation21 + $0x38] sm:$0xf]
    %v909 = vld [vmem:[#allocation21 + $0x3c] sm:$0xf]
    %v910 = vld [vmem:[#allocation21 + $0x40] sm:$0xf]
    %v911 = vld [vmem:[#allocation21 + $0x44] sm:$0xf]
    %v912 = vld [vmem:[#allocation21 + $0x48] sm:$0xf]
    %v913 = vld [vmem:[#allocation21 + $0x4c] sm:$0xf]
    %v914 = vld [vmem:[#allocation21 + $0x50] sm:$0xf]
    %v915 = vld [vmem:[#allocation21 + $0x54] sm:$0xf]
    %v916 = vld [vmem:[#allocation21 + $0x58] sm:$0xf]
    %v917 = vld [vmem:[#allocation21 + $0x5c] sm:$0xf]
    %v918 = vld [vmem:[#allocation21 + $0x60] sm:$0xf]
    %v919 = vld [vmem:[#allocation21 + $0x64] sm:$0xf]
    %v920 = vld [vmem:[#allocation21 + $0x68] sm:$0xf]
    %v921 = vld [vmem:[#allocation21 + $0x6c] sm:$0xf]
    %v922 = vld [vmem:[#allocation21 + $0x70] sm:$0xf]
    %v923 = vld [vmem:[#allocation21 + $0x74] sm:$0xf]
    %v924 = vld [vmem:[#allocation21 + $0x78] sm:$0xf]
    %v925 = vld [vmem:[#allocation21 + $0x7c] sm:$0xf]
    %v926 = vld [vmem:[%s3 + $0x1] sm:$0x1]
    %v927 = vpack.c.bf16 %v888, %v886
    %v928 = vpack.c.bf16 %v889, %v887
    %v929 = vpack.c.bf16 %v892, %v890
    %v930 = vpack.c.bf16 %v893, %v891
    %v931 = vperm.slane %v926, 0
    %v964 = vunpack.c.l.b16 %v894
    %v965 = vunpack.c.l.b16 %v895
    %v966 = vunpack.c.l.b16 %v896
    %v967 = vunpack.c.l.b16 %v897
    %v968 = vunpack.c.l.b16 %v898
    %v969 = vunpack.c.l.b16 %v899
    %v970 = vunpack.c.l.b16 %v900
    %v971 = vunpack.c.l.b16 %v901
    %v972 = vunpack.c.l.b16 %v902
    %v973 = vunpack.c.l.b16 %v903
    %v974 = vunpack.c.l.b16 %v904
    %v975 = vunpack.c.l.b16 %v905
    %v976 = vunpack.c.l.b16 %v906
    %v977 = vunpack.c.l.b16 %v907
    %v978 = vunpack.c.l.b16 %v908
    %v979 = vunpack.c.l.b16 %v909
    %v980 = vunpack.c.l.b16 %v910
    %v981 = vunpack.c.l.b16 %v911
    %v982 = vunpack.c.l.b16 %v912
    %v983 = vunpack.c.l.b16 %v913
    %v984 = vunpack.c.l.b16 %v914
    %v985 = vunpack.c.l.b16 %v915
    %v986 = vunpack.c.l.b16 %v916
    %v987 = vunpack.c.l.b16 %v917
    %v988 = vunpack.c.l.b16 %v918
    %v989 = vunpack.c.l.b16 %v919
    %v990 = vunpack.c.l.b16 %v920
    %v991 = vunpack.c.l.b16 %v921
    %v992 = vunpack.c.l.b16 %v922
    %v993 = vunpack.c.l.b16 %v923
    %v994 = vunpack.c.l.b16 %v924
    %v995 = vunpack.c.l.b16 %v925
    %v996 = vpack.c.b16 %v965, %v964
    %v997 = vpack.c.b16 %v967, %v966
    %v998 = vpack.c.b16 %v969, %v968
    %v999 = vpack.c.b16 %v971, %v970
    %v1000 = vpack.c.b16 %v973, %v972
    %v1001 = vpack.c.b16 %v975, %v974
    %v1002 = vpack.c.b16 %v977, %v976
    %v1003 = vpack.c.b16 %v979, %v978
    %v1004 = vpack.c.b16 %v981, %v980
    %v1005 = vpack.c.b16 %v983, %v982
    %v1006 = vpack.c.b16 %v985, %v984
    %v1007 = vpack.c.b16 %v987, %v986
    %v1008 = vpack.c.b16 %v989, %v988
    %v1009 = vpack.c.b16 %v991, %v990
    %v1010 = vpack.c.b16 %v993, %v992
    %v1011 = vpack.c.b16 %v995, %v994
    %1028 = vmatpush.bf16.msra.mxu0 %v1003
    %1029 = vmatpush.bf16.msra.mxu0 %v1002
    %1030 = vmatpush.bf16.msra.mxu0 %v1001
    %1031 = vmatpush.bf16.msra.mxu0 %v1000
    %1032 = vmatpush.bf16.msra.mxu0 %v999
    %1033 = vmatpush.bf16.msra.mxu0 %v998
    %1034 = vmatpush.bf16.msra.mxu0 %v997
    %1035 = vmatpush.bf16.msra.mxu0 %v996
    %1036 = vmatmul.bf16.gmra.mxu0 %v927
    %v1037 = vpop.f32.mrf.mxu0
    %v1038 = vadd.f32 %v931, %v1037
    %v1039 = vpop.f32.mrf.mxu0
    %v1040 = vadd.f32 %v931, %v1039
    %1041 = vmatmul.bf16.gmra.mxu0 %v929
    %v1042 = vpop.f32.mrf.mxu0
    %v1043 = vadd.f32 %v931, %v1042
    %v1044 = vpop.f32.mrf.mxu0
    %v1045 = vadd.f32 %v931, %v1044
    %1046 = vdwg.mxu0
    %1047 = vmatpush.bf16.msra.mxu0 %v1011
    %1048 = vmatpush.bf16.msra.mxu0 %v1010
    %1049 = vmatpush.bf16.msra.mxu0 %v1009
    %1050 = vmatpush.bf16.msra.mxu0 %v1008
    %1051 = vmatpush.bf16.msra.mxu0 %v1007
    %1052 = vmatpush.bf16.msra.mxu0 %v1006
    %1053 = vmatpush.bf16.msra.mxu0 %v1005
    %1054 = vmatpush.bf16.msra.mxu0 %v1004
    %1055 = vmatmul.bf16.gmra.mxu0 %v928
    %v1056 = vpop.f32.mrf.mxu0
    %v1057 = vadd.f32 %v1038, %v1056
    %v1058 = vpop.f32.mrf.mxu0
    %v1059 = vadd.f32 %v1040, %v1058
    %1060 = vmatmul.bf16.gmra.mxu0 %v930
    %v1061 = vpop.f32.mrf.mxu0
    %v1062 = vadd.f32 %v1043, %v1061
    %v1063 = vpop.f32.mrf.mxu0
    %v1064 = vadd.f32 %v1045, %v1063
    %1065 = vdwg.mxu0
    %v1066 = vadd.f32 %v740, %v1057
    %v1067 = vadd.f32 %v741, %v1059
    %v1068 = vadd.f32 %v742, %v1062
    %v1069 = vadd.f32 %v743, %v1064
    %v1070 = vld [vmem:[%s3 + $0x4] sm:$0x1]
    %v1071 = vld [vmem:[%s3 + $0x5] sm:$0x1]
    %1072 = vadd.xlane.f32.xlu0 %v1066
    %v1073 = vpop.xlane.xlu0 %1072
    %1074 = vadd.xlane.f32.xlu0 %v1067
    %v1075 = vpop.xlane.xlu0 %1074
    %1076 = vadd.xlane.f32.xlu0 %v1068
    %v1077 = vpop.xlane.xlu0 %1076
    %1078 = vadd.xlane.f32.xlu0 %v1069
    %v1079 = vpop.xlane.xlu0 %1078
    %v1080 = vmul.f32 %v1066, %v1066
    %v1081 = vmul.f32 %v1067, %v1067
    %v1082 = vmul.f32 %v1068, %v1068
    %v1083 = vmul.f32 %v1069, %v1069
    %1084 = vadd.xlane.f32.xlu0 %v1080
    %v1085 = vpop.xlane.xlu0 %1084
    %1086 = vadd.xlane.f32.xlu0 %v1081
    %v1087 = vpop.xlane.xlu0 %1086
    %1088 = vadd.xlane.f32.xlu0 %v1082
    %v1089 = vpop.xlane.xlu0 %1088
    %1090 = vadd.xlane.f32.xlu0 %v1083
    %v1091 = vpop.xlane.xlu0 %1090
    %v1092 = vmul.f32 %v1073, 0.0078125
    %v1093 = vmul.f32 %v1075, 0.0078125
    %v1094 = vmul.f32 %v1077, 0.0078125
    %v1095 = vmul.f32 %v1079, 0.0078125
    %v1096 = vmul.f32 %v1085, 0.0078125
    %v1097 = vmul.f32 %v1087, 0.0078125
    %v1098 = vmul.f32 %v1089, 0.0078125
    %v1099 = vmul.f32 %v1091, 0.0078125
    %v1100 = vmul.f32 %v1092, %v1092
    %v1101 = vmul.f32 %v1093, %v1093
    %v1102 = vmul.f32 %v1094, %v1094
    %v1103 = vmul.f32 %v1095, %v1095
    %v1104 = vsub.f32 %v1096, %v1100
    %v1105 = vsub.f32 %v1097, %v1101
    %v1106 = vsub.f32 %v1098, %v1102
    %v1107 = vsub.f32 %v1099, %v1103
    %v1108 = vsub.f32 %v1066, %v1092
    %v1109 = vsub.f32 %v1067, %v1093
    %v1110 = vsub.f32 %v1068, %v1094
    %v1111 = vsub.f32 %v1069, %v1095
    %v1112 = vadd.f32 %v1104, 1e-05
    %v1113 = vadd.f32 %v1105, 1e-05
    %v1114 = vadd.f32 %v1106, 1e-05
    %v1115 = vadd.f32 %v1107, 1e-05
    %v1116 = vrsqrt.pop %v1112
    %v1117 = vmul.f32 %v1116, %v1112
    %v1118 = vmul.f32 %v1117, %v1116
    %v1119 = vmul.f32 0.5, %v1118
    %v1120 = vsub.f32 1.5, %v1119
    %v1121 = vmul.f32 %v1116, %v1120
    %vm1122 = vweird.f32 %v1112
    %vm1123 = vweird.f32 %v1116
    %vm1124 = vmor %vm1122, %vm1123
    %v1125 = vsel %vm1124, %v1116, %v1121
    %v1126 = vrsqrt.pop %v1113
    %v1127 = vmul.f32 %v1126, %v1113
    %v1128 = vmul.f32 %v1127, %v1126
    %v1129 = vmul.f32 0.5, %v1128
    %v1130 = vsub.f32 1.5, %v1129
    %v1131 = vmul.f32 %v1126, %v1130
    %vm1132 = vweird.f32 %v1113
    %vm1133 = vweird.f32 %v1126
    %vm1134 = vmor %vm1132, %vm1133
    %v1135 = vsel %vm1134, %v1126, %v1131
    %v1136 = vrsqrt.pop %v1114
    %v1137 = vmul.f32 %v1136, %v1114
    %v1138 = vmul.f32 %v1137, %v1136
    %v1139 = vmul.f32 0.5, %v1138
    %v1140 = vsub.f32 1.5, %v1139
    %v1141 = vmul.f32 %v1136, %v1140
    %vm1142 = vweird.f32 %v1114
    %vm1143 = vweird.f32 %v1136
    %vm1144 = vmor %vm1142, %vm1143
    %v1145 = vsel %vm1144, %v1136, %v1141
    %v1146 = vrsqrt.pop %v1115
    %v1147 = vmul.f32 %v1146, %v1115
    %v1148 = vmul.f32 %v1147, %v1146
    %v1149 = vmul.f32 0.5, %v1148
    %v1150 = vsub.f32 1.5, %v1149
    %v1151 = vmul.f32 %v1146, %v1150
    %vm1152 = vweird.f32 %v1115
    %vm1153 = vweird.f32 %v1146
    %vm1154 = vmor %vm1152, %vm1153
    %v1155 = vsel %vm1154, %v1146, %v1151
    %v1156 = vmul.f32 %v1108, %v1125
    %v1157 = vmul.f32 %v1109, %v1135
    %v1158 = vmul.f32 %v1110, %v1145
    %v1159 = vmul.f32 %v1111, %v1155
    %v1160 = vperm.slane %v1070, 0
    %v1161 = vmul.f32 %v1156, %v1160
    %v1162 = vmul.f32 %v1157, %v1160
    %v1163 = vmul.f32 %v1158, %v1160
    %v1164 = vmul.f32 %v1159, %v1160
    %v1165 = vperm.slane %v1071, 0
    %v1166 = vadd.f32 %v1161, %v1165
    %v1167 = vadd.f32 %v1162, %v1165
    %v1168 = vadd.f32 %v1163, %v1165
    %v1169 = vadd.f32 %v1164, %v1165
    %s1170 = scalar_lea.vmem [#allocation17], 128
    %v1171 = vld [vmem:[%s1170] sm:$0xf]
    %v1172 = vld [vmem:[%s1170 + $0x4] sm:$0xf]
    %v1173 = vld [vmem:[%s1170 + $0x8] sm:$0xf]
    %v1174 = vld [vmem:[%s1170 + $0xc] sm:$0xf]
    %v1175 = vld [vmem:[%s1170 + $0x10] sm:$0xf]
    %v1176 = vld [vmem:[%s1170 + $0x14] sm:$0xf]
    %v1177 = vld [vmem:[%s1170 + $0x18] sm:$0xf]
    %v1178 = vld [vmem:[%s1170 + $0x1c] sm:$0xf]
    %v1179 = vld [vmem:[%s1170 + $0x20] sm:$0xf]
    %v1180 = vld [vmem:[%s1170 + $0x24] sm:$0xf]
    %v1181 = vld [vmem:[%s1170 + $0x28] sm:$0xf]
    %v1182 = vld [vmem:[%s1170 + $0x2c] sm:$0xf]
    %v1183 = vld [vmem:[%s1170 + $0x30] sm:$0xf]
    %v1184 = vld [vmem:[%s1170 + $0x34] sm:$0xf]
    %v1185 = vld [vmem:[%s1170 + $0x38] sm:$0xf]
    %v1186 = vld [vmem:[%s1170 + $0x3c] sm:$0xf]
    %s1187 = scalar_lea.vmem %s3, 8
    %v1188 = vld [vmem:[%s1187] sm:$0x1]
    %v1189 = vpack.c.bf16 %v1167, %v1166
    %v1190 = vpack.c.bf16 %v1169, %v1168
    %v1191 = vperm.slane %v1188, 0
    %v1208 = vunpack.c.l.b16 %v1171
    %v1209 = vunpack.c.l.b16 %v1172
    %v1210 = vunpack.c.l.b16 %v1173
    %v1211 = vunpack.c.l.b16 %v1174
    %v1212 = vunpack.c.l.b16 %v1175
    %v1213 = vunpack.c.l.b16 %v1176
    %v1214 = vunpack.c.l.b16 %v1177
    %v1215 = vunpack.c.l.b16 %v1178
    %v1216 = vunpack.c.l.b16 %v1179
    %v1217 = vunpack.c.l.b16 %v1180
    %v1218 = vunpack.c.l.b16 %v1181
    %v1219 = vunpack.c.l.b16 %v1182
    %v1220 = vunpack.c.l.b16 %v1183
    %v1221 = vunpack.c.l.b16 %v1184
    %v1222 = vunpack.c.l.b16 %v1185
    %v1223 = vunpack.c.l.b16 %v1186
    %v1224 = vpack.c.b16 %v1209, %v1208
    %v1225 = vpack.c.b16 %v1211, %v1210
    %v1226 = vpack.c.b16 %v1213, %v1212
    %v1227 = vpack.c.b16 %v1215, %v1214
    %v1228 = vpack.c.b16 %v1217, %v1216
    %v1229 = vpack.c.b16 %v1219, %v1218
    %v1230 = vpack.c.b16 %v1221, %v1220
    %v1231 = vpack.c.b16 %v1223, %v1222
    %1240 = vmatpush.bf16.msra.mxu0 %v1231
    %1241 = vmatpush.bf16.msra.mxu0 %v1230
    %1242 = vmatpush.bf16.msra.mxu0 %v1229
    %1243 = vmatpush.bf16.msra.mxu0 %v1228
    %1244 = vmatpush.bf16.msra.mxu0 %v1227
    %1245 = vmatpush.bf16.msra.mxu0 %v1226
    %1246 = vmatpush.bf16.msra.mxu0 %v1225
    %1247 = vmatpush.bf16.msra.mxu0 %v1224
    %1248 = vmatmul.bf16.gmra.mxu0 %v1189
    %v1249 = vpop.f32.mrf.mxu0
    %v1250 = vadd.f32 %v1191, %v1249
    %v1251 = vpop.f32.mrf.mxu0
    %v1252 = vadd.f32 %v1191, %v1251
    %1253 = vmatmul.bf16.gmra.mxu0 %v1190
    %v1254 = vpop.f32.mrf.mxu0
    %v1255 = vadd.f32 %v1191, %v1254
    %v1256 = vpop.f32.mrf.mxu0
    %v1257 = vadd.f32 %v1191, %v1256
    %1258 = vdwg.mxu0
    %v1259 = vadd.f32 %v1166, %v1250
    %v1260 = vadd.f32 %v1167, %v1252
    %v1261 = vadd.f32 %v1168, %v1255
    %v1262 = vadd.f32 %v1169, %v1257
    %v1263 = vld [vmem:[%s1187 + $0x2] sm:$0x1]
    %v1264 = vld [vmem:[%s1187 + $0x3] sm:$0x1]
    %1265 = vadd.xlane.f32.xlu0 %v1259
    %v1266 = vpop.xlane.xlu0 %1265
    %1267 = vadd.xlane.f32.xlu0 %v1260
    %v1268 = vpop.xlane.xlu0 %1267
    %1269 = vadd.xlane.f32.xlu0 %v1261
    %v1270 = vpop.xlane.xlu0 %1269
    %1271 = vadd.xlane.f32.xlu0 %v1262
    %v1272 = vpop.xlane.xlu0 %1271
    %v1273 = vmul.f32 %v1259, %v1259
    %v1274 = vmul.f32 %v1260, %v1260
    %v1275 = vmul.f32 %v1261, %v1261
    %v1276 = vmul.f32 %v1262, %v1262
    %1277 = vadd.xlane.f32.xlu0 %v1273
    %v1278 = vpop.xlane.xlu0 %1277
    %1279 = vadd.xlane.f32.xlu0 %v1274
    %v1280 = vpop.xlane.xlu0 %1279
    %1281 = vadd.xlane.f32.xlu0 %v1275
    %v1282 = vpop.xlane.xlu0 %1281
    %1283 = vadd.xlane.f32.xlu0 %v1276
    %v1284 = vpop.xlane.xlu0 %1283
    %v1285 = vmul.f32 %v1266, 0.0078125
    %v1286 = vmul.f32 %v1268, 0.0078125
    %v1287 = vmul.f32 %v1270, 0.0078125
    %v1288 = vmul.f32 %v1272, 0.0078125
    %v1289 = vmul.f32 %v1278, 0.0078125
    %v1290 = vmul.f32 %v1280, 0.0078125
    %v1291 = vmul.f32 %v1282, 0.0078125
    %v1292 = vmul.f32 %v1284, 0.0078125
    %v1293 = vmul.f32 %v1285, %v1285
    %v1294 = vmul.f32 %v1286, %v1286
    %v1295 = vmul.f32 %v1287, %v1287
    %v1296 = vmul.f32 %v1288, %v1288
    %v1297 = vsub.f32 %v1289, %v1293
    %v1298 = vsub.f32 %v1290, %v1294
    %v1299 = vsub.f32 %v1291, %v1295
    %v1300 = vsub.f32 %v1292, %v1296
    %v1301 = vsub.f32 %v1259, %v1285
    %v1302 = vsub.f32 %v1260, %v1286
    %v1303 = vsub.f32 %v1261, %v1287
    %v1304 = vsub.f32 %v1262, %v1288
    %v1305 = vadd.f32 %v1297, 1e-05
    %v1306 = vadd.f32 %v1298, 1e-05
    %v1307 = vadd.f32 %v1299, 1e-05
    %v1308 = vadd.f32 %v1300, 1e-05
    %v1309 = vrsqrt.pop %v1305
    %v1310 = vmul.f32 %v1309, %v1305
    %v1311 = vmul.f32 %v1310, %v1309
    %v1312 = vmul.f32 0.5, %v1311
    %v1313 = vsub.f32 1.5, %v1312
    %v1314 = vmul.f32 %v1309, %v1313
    %vm1315 = vweird.f32 %v1305
    %vm1316 = vweird.f32 %v1309
    %vm1317 = vmor %vm1315, %vm1316
    %v1318 = vsel %vm1317, %v1309, %v1314
    %v1319 = vrsqrt.pop %v1306
    %v1320 = vmul.f32 %v1319, %v1306
    %v1321 = vmul.f32 %v1320, %v1319
    %v1322 = vmul.f32 0.5, %v1321
    %v1323 = vsub.f32 1.5, %v1322
    %v1324 = vmul.f32 %v1319, %v1323
    %vm1325 = vweird.f32 %v1306
    %vm1326 = vweird.f32 %v1319
    %vm1327 = vmor %vm1325, %vm1326
    %v1328 = vsel %vm1327, %v1319, %v1324
    %v1329 = vrsqrt.pop %v1307
    %v1330 = vmul.f32 %v1329, %v1307
    %v1331 = vmul.f32 %v1330, %v1329
    %v1332 = vmul.f32 0.5, %v1331
    %v1333 = vsub.f32 1.5, %v1332
    %v1334 = vmul.f32 %v1329, %v1333
    %vm1335 = vweird.f32 %v1307
    %vm1336 = vweird.f32 %v1329
    %vm1337 = vmor %vm1335, %vm1336
    %v1338 = vsel %vm1337, %v1329, %v1334
    %v1339 = vrsqrt.pop %v1308
    %v1340 = vmul.f32 %v1339, %v1308
    %v1341 = vmul.f32 %v1340, %v1339
    %v1342 = vmul.f32 0.5, %v1341
    %v1343 = vsub.f32 1.5, %v1342
    %v1344 = vmul.f32 %v1339, %v1343
    %vm1345 = vweird.f32 %v1308
    %vm1346 = vweird.f32 %v1339
    %vm1347 = vmor %vm1345, %vm1346
    %v1348 = vsel %vm1347, %v1339, %v1344
    %v1349 = vmul.f32 %v1301, %v1318
    %v1350 = vmul.f32 %v1302, %v1328
    %v1351 = vmul.f32 %v1303, %v1338
    %v1352 = vmul.f32 %v1304, %v1348
    %v1353 = vperm.slane %v1263, 0
    %v1354 = vmul.f32 %v1349, %v1353
    %v1355 = vmul.f32 %v1350, %v1353
    %v1356 = vmul.f32 %v1351, %v1353
    %v1357 = vmul.f32 %v1352, %v1353
    %v1358 = vperm.slane %v1264, 0
    %v1359 = vadd.f32 %v1354, %v1358
    %v1360 = vadd.f32 %v1355, %v1358
    %v1361 = vadd.f32 %v1356, %v1358
    %v1362 = vadd.f32 %v1357, %v1358
    %s1363 = scalar_lea.vmem [#allocation19], 128
    %v1364 = vld [vmem:[%s1363] sm:$0xff]
    %v1365 = vld [vmem:[%s1363 + $0x8] sm:$0xff]
    %v1366 = vld [vmem:[%s1363 + $0x10] sm:$0xff]
    %v1367 = vld [vmem:[%s1363 + $0x18] sm:$0xff]
    %v1368 = vld [vmem:[%s1363 + $0x20] sm:$0xff]
    %v1369 = vld [vmem:[%s1363 + $0x28] sm:$0xff]
    %v1370 = vld [vmem:[%s1363 + $0x30] sm:$0xff]
    %v1371 = vld [vmem:[%s1363 + $0x38] sm:$0xff]
    %v1372 = vld [vmem:[%s1363 + $0x40] sm:$0xff]
    %v1373 = vld [vmem:[%s1363 + $0x48] sm:$0xff]
    %v1374 = vld [vmem:[%s1363 + $0x50] sm:$0xff]
    %v1375 = vld [vmem:[%s1363 + $0x58] sm:$0xff]
    %v1376 = vld [vmem:[%s1363 + $0x60] sm:$0xff]
    %v1377 = vld [vmem:[%s1363 + $0x68] sm:$0xff]
    %v1378 = vld [vmem:[%s1363 + $0x70] sm:$0xff]
    %v1379 = vld [vmem:[%s1363 + $0x78] sm:$0xff]
    %s1380 = scalar_lea.vmem %s4, 2
    %v1381 = vld [vmem:[%s1380] sm:$0x3]
    %v1382 = vpack.c.bf16 %v1360, %v1359
    %v1383 = vpack.c.bf16 %v1362, %v1361
    %v1385 = vperm.slane %v1381, 0
    %v1386 = vperm.slane %v1381, 1
    %v1405 = vunpack.c.l.b16 %v1364
    %v1406 = vunpack.c.h.b16 %v1364
    %v1407 = vunpack.c.l.b16 %v1365
    %v1408 = vunpack.c.h.b16 %v1365
    %v1409 = vunpack.c.l.b16 %v1366
    %v1410 = vunpack.c.h.b16 %v1366
    %v1411 = vunpack.c.l.b16 %v1367
    %v1412 = vunpack.c.h.b16 %v1367
    %v1413 = vunpack.c.l.b16 %v1368
    %v1414 = vunpack.c.h.b16 %v1368
    %v1415 = vunpack.c.l.b16 %v1369
    %v1416 = vunpack.c.h.b16 %v1369
    %v1417 = vunpack.c.l.b16 %v1370
    %v1418 = vunpack.c.h.b16 %v1370
    %v1419 = vunpack.c.l.b16 %v1371
    %v1420 = vunpack.c.h.b16 %v1371
    %v1421 = vunpack.c.l.b16 %v1372
    %v1422 = vunpack.c.h.b16 %v1372
    %v1423 = vunpack.c.l.b16 %v1373
    %v1424 = vunpack.c.h.b16 %v1373
    %v1425 = vunpack.c.l.b16 %v1374
    %v1426 = vunpack.c.h.b16 %v1374
    %v1427 = vunpack.c.l.b16 %v1375
    %v1428 = vunpack.c.h.b16 %v1375
    %v1429 = vunpack.c.l.b16 %v1376
    %v1430 = vunpack.c.h.b16 %v1376
    %v1431 = vunpack.c.l.b16 %v1377
    %v1432 = vunpack.c.h.b16 %v1377
    %v1433 = vunpack.c.l.b16 %v1378
    %v1434 = vunpack.c.h.b16 %v1378
    %v1435 = vunpack.c.l.b16 %v1379
    %v1436 = vunpack.c.h.b16 %v1379
    %v1437 = vpack.c.b16 %v1407, %v1405
    %v1438 = vpack.c.b16 %v1408, %v1406
    %v1439 = vpack.c.b16 %v1411, %v1409
    %v1440 = vpack.c.b16 %v1412, %v1410
    %v1441 = vpack.c.b16 %v1415, %v1413
    %v1442 = vpack.c.b16 %v1416, %v1414
    %v1443 = vpack.c.b16 %v1419, %v1417
    %v1444 = vpack.c.b16 %v1420, %v1418
    %v1445 = vpack.c.b16 %v1423, %v1421
    %v1446 = vpack.c.b16 %v1424, %v1422
    %v1447 = vpack.c.b16 %v1427, %v1425
    %v1448 = vpack.c.b16 %v1428, %v1426
    %v1449 = vpack.c.b16 %v1431, %v1429
    %v1450 = vpack.c.b16 %v1432, %v1430
    %v1451 = vpack.c.b16 %v1435, %v1433
    %v1452 = vpack.c.b16 %v1436, %v1434
    %1469 = vmatpush.bf16.msra.mxu0 %v1451
    %1470 = vmatpush.bf16.msra.mxu0 %v1449
    %1471 = vmatpush.bf16.msra.mxu0 %v1447
    %1472 = vmatpush.bf16.msra.mxu0 %v1445
    %1473 = vmatpush.bf16.msra.mxu0 %v1443
    %1474 = vmatpush.bf16.msra.mxu0 %v1441
    %1475 = vmatpush.bf16.msra.mxu0 %v1439
    %1476 = vmatpush.bf16.msra.mxu0 %v1437
    %1477 = vmatmul.bf16.gmra.mxu0 %v1382
    %v1478 = vpop.f32.mrf.mxu0
    %v1479 = vadd.f32 %v1385, %v1478
    %v1480 = vpop.f32.mrf.mxu0
    %v1481 = vadd.f32 %v1385, %v1480
    %1482 = vmatmul.bf16.gmra.mxu0 %v1383
    %v1483 = vpop.f32.mrf.mxu0
    %v1484 = vadd.f32 %v1385, %v1483
    %v1485 = vpop.f32.mrf.mxu0
    %v1486 = vadd.f32 %v1385, %v1485
    %1487 = vdwg.mxu0
    %1488 = vmatpush.bf16.msra.mxu0 %v1452
    %1489 = vmatpush.bf16.msra.mxu0 %v1450
    %1490 = vmatpush.bf16.msra.mxu0 %v1448
    %1491 = vmatpush.bf16.msra.mxu0 %v1446
    %1492 = vmatpush.bf16.msra.mxu0 %v1444
    %1493 = vmatpush.bf16.msra.mxu0 %v1442
    %1494 = vmatpush.bf16.msra.mxu0 %v1440
    %1495 = vmatpush.bf16.msra.mxu0 %v1438
    %1496 = vmatmul.bf16.gmra.mxu0 %v1382
    %v1497 = vpop.f32.mrf.mxu0
    %v1498 = vadd.f32 %v1386, %v1497
    %v1499 = vpop.f32.mrf.mxu0
    %v1500 = vadd.f32 %v1386, %v1499
    %1501 = vmatmul.bf16.gmra.mxu0 %v1383
    %v1502 = vpop.f32.mrf.mxu0
    %v1503 = vadd.f32 %v1386, %v1502
    %v1504 = vpop.f32.mrf.mxu0
    %v1505 = vadd.f32 %v1386, %v1504
    %1506 = vdwg.mxu0
    %v1507 = vmax.f32 %v1479, 0.0
    %v1508 = vmax.f32 %v1498, 0.0
    %v1509 = vmax.f32 %v1481, 0.0
    %v1510 = vmax.f32 %v1500, 0.0
    %v1511 = vmax.f32 %v1484, 0.0
    %v1512 = vmax.f32 %v1503, 0.0
    %v1513 = vmax.f32 %v1486, 0.0
    %v1514 = vmax.f32 %v1505, 0.0
    %s1515 = scalar_lea.vmem [#allocation21], 128
    %v1516 = vld [vmem:[%s1515] sm:$0xf]
    %v1517 = vld [vmem:[%s1515 + $0x4] sm:$0xf]
    %v1518 = vld [vmem:[%s1515 + $0x8] sm:$0xf]
    %v1519 = vld [vmem:[%s1515 + $0xc] sm:$0xf]
    %v1520 = vld [vmem:[%s1515 + $0x10] sm:$0xf]
    %v1521 = vld [vmem:[%s1515 + $0x14] sm:$0xf]
    %v1522 = vld [vmem:[%s1515 + $0x18] sm:$0xf]
    %v1523 = vld [vmem:[%s1515 + $0x1c] sm:$0xf]
    %v1524 = vld [vmem:[%s1515 + $0x20] sm:$0xf]
    %v1525 = vld [vmem:[%s1515 + $0x24] sm:$0xf]
    %v1526 = vld [vmem:[%s1515 + $0x28] sm:$0xf]
    %v1527 = vld [vmem:[%s1515 + $0x2c] sm:$0xf]
    %v1528 = vld [vmem:[%s1515 + $0x30] sm:$0xf]
    %v1529 = vld [vmem:[%s1515 + $0x34] sm:$0xf]
    %v1530 = vld [vmem:[%s1515 + $0x38] sm:$0xf]
    %v1531 = vld [vmem:[%s1515 + $0x3c] sm:$0xf]
    %v1532 = vld [vmem:[%s1515 + $0x40] sm:$0xf]
    %v1533 = vld [vmem:[%s1515 + $0x44] sm:$0xf]
    %v1534 = vld [vmem:[%s1515 + $0x48] sm:$0xf]
    %v1535 = vld [vmem:[%s1515 + $0x4c] sm:$0xf]
    %v1536 = vld [vmem:[%s1515 + $0x50] sm:$0xf]
    %v1537 = vld [vmem:[%s1515 + $0x54] sm:$0xf]
    %v1538 = vld [vmem:[%s1515 + $0x58] sm:$0xf]
    %v1539 = vld [vmem:[%s1515 + $0x5c] sm:$0xf]
    %v1540 = vld [vmem:[%s1515 + $0x60] sm:$0xf]
    %v1541 = vld [vmem:[%s1515 + $0x64] sm:$0xf]
    %v1542 = vld [vmem:[%s1515 + $0x68] sm:$0xf]
    %v1543 = vld [vmem:[%s1515 + $0x6c] sm:$0xf]
    %v1544 = vld [vmem:[%s1515 + $0x70] sm:$0xf]
    %v1545 = vld [vmem:[%s1515 + $0x74] sm:$0xf]
    %v1546 = vld [vmem:[%s1515 + $0x78] sm:$0xf]
    %v1547 = vld [vmem:[%s1515 + $0x7c] sm:$0xf]
    %v1548 = vld [vmem:[%s1187 + $0x1] sm:$0x1]
    %v1549 = vpack.c.bf16 %v1509, %v1507
    %v1550 = vpack.c.bf16 %v1510, %v1508
    %v1551 = vpack.c.bf16 %v1513, %v1511
    %v1552 = vpack.c.bf16 %v1514, %v1512
    %v1553 = vperm.slane %v1548, 0
    %v1586 = vunpack.c.l.b16 %v1516
    %v1587 = vunpack.c.l.b16 %v1517
    %v1588 = vunpack.c.l.b16 %v1518
    %v1589 = vunpack.c.l.b16 %v1519
    %v1590 = vunpack.c.l.b16 %v1520
    %v1591 = vunpack.c.l.b16 %v1521
    %v1592 = vunpack.c.l.b16 %v1522
    %v1593 = vunpack.c.l.b16 %v1523
    %v1594 = vunpack.c.l.b16 %v1524
    %v1595 = vunpack.c.l.b16 %v1525
    %v1596 = vunpack.c.l.b16 %v1526
    %v1597 = vunpack.c.l.b16 %v1527
    %v1598 = vunpack.c.l.b16 %v1528
    %v1599 = vunpack.c.l.b16 %v1529
    %v1600 = vunpack.c.l.b16 %v1530
    %v1601 = vunpack.c.l.b16 %v1531
    %v1602 = vunpack.c.l.b16 %v1532
    %v1603 = vunpack.c.l.b16 %v1533
    %v1604 = vunpack.c.l.b16 %v1534
    %v1605 = vunpack.c.l.b16 %v1535
    %v1606 = vunpack.c.l.b16 %v1536
    %v1607 = vunpack.c.l.b16 %v1537
    %v1608 = vunpack.c.l.b16 %v1538
    %v1609 = vunpack.c.l.b16 %v1539
    %v1610 = vunpack.c.l.b16 %v1540
    %v1611 = vunpack.c.l.b16 %v1541
    %v1612 = vunpack.c.l.b16 %v1542
    %v1613 = vunpack.c.l.b16 %v1543
    %v1614 = vunpack.c.l.b16 %v1544
    %v1615 = vunpack.c.l.b16 %v1545
    %v1616 = vunpack.c.l.b16 %v1546
    %v1617 = vunpack.c.l.b16 %v1547
    %v1618 = vpack.c.b16 %v1587, %v1586
    %v1619 = vpack.c.b16 %v1589, %v1588
    %v1620 = vpack.c.b16 %v1591, %v1590
    %v1621 = vpack.c.b16 %v1593, %v1592
    %v1622 = vpack.c.b16 %v1595, %v1594
    %v1623 = vpack.c.b16 %v1597, %v1596
    %v1624 = vpack.c.b16 %v1599, %v1598
    %v1625 = vpack.c.b16 %v1601, %v1600
    %v1626 = vpack.c.b16 %v1603, %v1602
    %v1627 = vpack.c.b16 %v1605, %v1604
    %v1628 = vpack.c.b16 %v1607, %v1606
    %v1629 = vpack.c.b16 %v1609, %v1608
    %v1630 = vpack.c.b16 %v1611, %v1610
    %v1631 = vpack.c.b16 %v1613, %v1612
    %v1632 = vpack.c.b16 %v1615, %v1614
    %v1633 = vpack.c.b16 %v1617, %v1616
    %1650 = vmatpush.bf16.msra.mxu0 %v1625
    %1651 = vmatpush.bf16.msra.mxu0 %v1624
    %1652 = vmatpush.bf16.msra.mxu0 %v1623
    %1653 = vmatpush.bf16.msra.mxu0 %v1622
    %1654 = vmatpush.bf16.msra.mxu0 %v1621
    %1655 = vmatpush.bf16.msra.mxu0 %v1620
    %1656 = vmatpush.bf16.msra.mxu0 %v1619
    %1657 = vmatpush.bf16.msra.mxu0 %v1618
    %1658 = vmatmul.bf16.gmra.mxu0 %v1549
    %v1659 = vpop.f32.mrf.mxu0
    %v1660 = vadd.f32 %v1553, %v1659
    %v1661 = vpop.f32.mrf.mxu0
    %v1662 = vadd.f32 %v1553, %v1661
    %1663 = vmatmul.bf16.gmra.mxu0 %v1551
    %v1664 = vpop.f32.mrf.mxu0
    %v1665 = vadd.f32 %v1553, %v1664
    %v1666 = vpop.f32.mrf.mxu0
    %v1667 = vadd.f32 %v1553, %v1666
    %1668 = vdwg.mxu0
    %1669 = vmatpush.bf16.msra.mxu0 %v1633
    %1670 = vmatpush.bf16.msra.mxu0 %v1632
    %1671 = vmatpush.bf16.msra.mxu0 %v1631
    %1672 = vmatpush.bf16.msra.mxu0 %v1630
    %1673 = vmatpush.bf16.msra.mxu0 %v1629
    %1674 = vmatpush.bf16.msra.mxu0 %v1628
    %1675 = vmatpush.bf16.msra.mxu0 %v1627
    %1676 = vmatpush.bf16.msra.mxu0 %v1626
    %1677 = vmatmul.bf16.gmra.mxu0 %v1550
    %v1678 = vpop.f32.mrf.mxu0
    %v1679 = vadd.f32 %v1660, %v1678
    %v1680 = vpop.f32.mrf.mxu0
    %v1681 = vadd.f32 %v1662, %v1680
    %1682 = vmatmul.bf16.gmra.mxu0 %v1552
    %v1683 = vpop.f32.mrf.mxu0
    %v1684 = vadd.f32 %v1665, %v1683
    %v1685 = vpop.f32.mrf.mxu0
    %v1686 = vadd.f32 %v1667, %v1685
    %1687 = vdwg.mxu0
    %v1688 = vadd.f32 %v1359, %v1679
    %v1689 = vadd.f32 %v1360, %v1681
    %v1690 = vadd.f32 %v1361, %v1684
    %v1691 = vadd.f32 %v1362, %v1686
    %v1692 = vld [vmem:[%s1187 + $0x4] sm:$0x1]
    %v1693 = vld [vmem:[%s1187 + $0x5] sm:$0x1]
    %1694 = vadd.xlane.f32.xlu0 %v1688
    %v1695 = vpop.xlane.xlu0 %1694
    %1696 = vadd.xlane.f32.xlu0 %v1689
    %v1697 = vpop.xlane.xlu0 %1696
    %1698 = vadd.xlane.f32.xlu0 %v1690
    %v1699 = vpop.xlane.xlu0 %1698
    %1700 = vadd.xlane.f32.xlu0 %v1691
    %v1701 = vpop.xlane.xlu0 %1700
    %v1702 = vmul.f32 %v1688, %v1688
    %v1703 = vmul.f32 %v1689, %v1689
    %v1704 = vmul.f32 %v1690, %v1690
    %v1705 = vmul.f32 %v1691, %v1691
    %1706 = vadd.xlane.f32.xlu0 %v1702
    %v1707 = vpop.xlane.xlu0 %1706
    %1708 = vadd.xlane.f32.xlu0 %v1703
    %v1709 = vpop.xlane.xlu0 %1708
    %1710 = vadd.xlane.f32.xlu0 %v1704
    %v1711 = vpop.xlane.xlu0 %1710
    %1712 = vadd.xlane.f32.xlu0 %v1705
    %v1713 = vpop.xlane.xlu0 %1712
    %v1714 = vmul.f32 %v1695, 0.0078125
    %v1715 = vmul.f32 %v1697, 0.0078125
    %v1716 = vmul.f32 %v1699, 0.0078125
    %v1717 = vmul.f32 %v1701, 0.0078125
    %v1718 = vmul.f32 %v1707, 0.0078125
    %v1719 = vmul.f32 %v1709, 0.0078125
    %v1720 = vmul.f32 %v1711, 0.0078125
    %v1721 = vmul.f32 %v1713, 0.0078125
    %v1722 = vmul.f32 %v1714, %v1714
    %v1723 = vmul.f32 %v1715, %v1715
    %v1724 = vmul.f32 %v1716, %v1716
    %v1725 = vmul.f32 %v1717, %v1717
    %v1726 = vsub.f32 %v1718, %v1722
    %v1727 = vsub.f32 %v1719, %v1723
    %v1728 = vsub.f32 %v1720, %v1724
    %v1729 = vsub.f32 %v1721, %v1725
    %v1730 = vsub.f32 %v1688, %v1714
    %v1731 = vsub.f32 %v1689, %v1715
    %v1732 = vsub.f32 %v1690, %v1716
    %v1733 = vsub.f32 %v1691, %v1717
    %v1734 = vadd.f32 %v1726, 1e-05
    %v1735 = vadd.f32 %v1727, 1e-05
    %v1736 = vadd.f32 %v1728, 1e-05
    %v1737 = vadd.f32 %v1729, 1e-05
    %v1738 = vrsqrt.pop %v1734
    %v1739 = vmul.f32 %v1738, %v1734
    %v1740 = vmul.f32 %v1739, %v1738
    %v1741 = vmul.f32 0.5, %v1740
    %v1742 = vsub.f32 1.5, %v1741
    %v1743 = vmul.f32 %v1738, %v1742
    %vm1744 = vweird.f32 %v1734
    %vm1745 = vweird.f32 %v1738
    %vm1746 = vmor %vm1744, %vm1745
    %v1747 = vsel %vm1746, %v1738, %v1743
    %v1748 = vrsqrt.pop %v1735
    %v1749 = vmul.f32 %v1748, %v1735
    %v1750 = vmul.f32 %v1749, %v1748
    %v1751 = vmul.f32 0.5, %v1750
    %v1752 = vsub.f32 1.5, %v1751
    %v1753 = vmul.f32 %v1748, %v1752
    %vm1754 = vweird.f32 %v1735
    %vm1755 = vweird.f32 %v1748
    %vm1756 = vmor %vm1754, %vm1755
    %v1757 = vsel %vm1756, %v1748, %v1753
    %v1758 = vrsqrt.pop %v1736
    %v1759 = vmul.f32 %v1758, %v1736
    %v1760 = vmul.f32 %v1759, %v1758
    %v1761 = vmul.f32 0.5, %v1760
    %v1762 = vsub.f32 1.5, %v1761
    %v1763 = vmul.f32 %v1758, %v1762
    %vm1764 = vweird.f32 %v1736
    %vm1765 = vweird.f32 %v1758
    %vm1766 = vmor %vm1764, %vm1765
    %v1767 = vsel %vm1766, %v1758, %v1763
    %v1768 = vrsqrt.pop %v1737
    %v1769 = vmul.f32 %v1768, %v1737
    %v1770 = vmul.f32 %v1769, %v1768
    %v1771 = vmul.f32 0.5, %v1770
    %v1772 = vsub.f32 1.5, %v1771
    %v1773 = vmul.f32 %v1768, %v1772
    %vm1774 = vweird.f32 %v1737
    %vm1775 = vweird.f32 %v1768
    %vm1776 = vmor %vm1774, %vm1775
    %v1777 = vsel %vm1776, %v1768, %v1773
    %v1778 = vmul.f32 %v1730, %v1747
    %v1779 = vmul.f32 %v1731, %v1757
    %v1780 = vmul.f32 %v1732, %v1767
    %v1781 = vmul.f32 %v1733, %v1777
    %v1782 = vperm.slane %v1692, 0
    %v1783 = vmul.f32 %v1778, %v1782
    %v1784 = vmul.f32 %v1779, %v1782
    %v1785 = vmul.f32 %v1780, %v1782
    %v1786 = vmul.f32 %v1781, %v1782
    %v1787 = vperm.slane %v1693, 0
    %v1788 = vadd.f32 %v1783, %v1787
    %v1789 = vadd.f32 %v1784, %v1787
    %v1790 = vadd.f32 %v1785, %v1787
    %v1791 = vadd.f32 %v1786, %v1787
    %s1792 = scalar_lea.vmem [#allocation17], 192
    %v1793 = vld [vmem:[%s1792] sm:$0xf]
    %v1794 = vld [vmem:[%s1792 + $0x4] sm:$0xf]
    %v1795 = vld [vmem:[%s1792 + $0x8] sm:$0xf]
    %v1796 = vld [vmem:[%s1792 + $0xc] sm:$0xf]
    %v1797 = vld [vmem:[%s1792 + $0x10] sm:$0xf]
    %v1798 = vld [vmem:[%s1792 + $0x14] sm:$0xf]
    %v1799 = vld [vmem:[%s1792 + $0x18] sm:$0xf]
    %v1800 = vld [vmem:[%s1792 + $0x1c] sm:$0xf]
    %v1801 = vld [vmem:[%s1792 + $0x20] sm:$0xf]
    %v1802 = vld [vmem:[%s1792 + $0x24] sm:$0xf]
    %v1803 = vld [vmem:[%s1792 + $0x28] sm:$0xf]
    %v1804 = vld [vmem:[%s1792 + $0x2c] sm:$0xf]
    %v1805 = vld [vmem:[%s1792 + $0x30] sm:$0xf]
    %v1806 = vld [vmem:[%s1792 + $0x34] sm:$0xf]
    %v1807 = vld [vmem:[%s1792 + $0x38] sm:$0xf]
    %v1808 = vld [vmem:[%s1792 + $0x3c] sm:$0xf]
    %v1809 = vld [vmem:[%s5 + $0x1] sm:$0x1]
    %v1810 = vpack.c.bf16 %v1789, %v1788
    %v1811 = vpack.c.bf16 %v1791, %v1790
    %v1812 = vperm.slane %v1809, 0
    %v1829 = vunpack.c.l.b16 %v1793
    %v1830 = vunpack.c.l.b16 %v1794
    %v1831 = vunpack.c.l.b16 %v1795
    %v1832 = vunpack.c.l.b16 %v1796
    %v1833 = vunpack.c.l.b16 %v1797
    %v1834 = vunpack.c.l.b16 %v1798
    %v1835 = vunpack.c.l.b16 %v1799
    %v1836 = vunpack.c.l.b16 %v1800
    %v1837 = vunpack.c.l.b16 %v1801
    %v1838 = vunpack.c.l.b16 %v1802
    %v1839 = vunpack.c.l.b16 %v1803
    %v1840 = vunpack.c.l.b16 %v1804
    %v1841 = vunpack.c.l.b16 %v1805
    %v1842 = vunpack.c.l.b16 %v1806
    %v1843 = vunpack.c.l.b16 %v1807
    %v1844 = vunpack.c.l.b16 %v1808
    %v1845 = vpack.c.b16 %v1830, %v1829
    %v1846 = vpack.c.b16 %v1832, %v1831
    %v1847 = vpack.c.b16 %v1834, %v1833
    %v1848 = vpack.c.b16 %v1836, %v1835
    %v1849 = vpack.c.b16 %v1838, %v1837
    %v1850 = vpack.c.b16 %v1840, %v1839
    %v1851 = vpack.c.b16 %v1842, %v1841
    %v1852 = vpack.c.b16 %v1844, %v1843
    %1861 = vmatpush.bf16.msra.mxu0 %v1852
    %1862 = vmatpush.bf16.msra.mxu0 %v1851
    %1863 = vmatpush.bf16.msra.mxu0 %v1850
    %1864 = vmatpush.bf16.msra.mxu0 %v1849
    %1865 = vmatpush.bf16.msra.mxu0 %v1848
    %1866 = vmatpush.bf16.msra.mxu0 %v1847
    %1867 = vmatpush.bf16.msra.mxu0 %v1846
    %1868 = vmatpush.bf16.msra.mxu0 %v1845
    %1869 = vmatmul.bf16.gmra.mxu0 %v1810
    %v1870 = vpop.f32.mrf.mxu0
    %v1871 = vadd.f32 %v1812, %v1870
    %v1872 = vpop.f32.mrf.mxu0
    %v1873 = vadd.f32 %v1812, %v1872
    %1874 = vmatmul.bf16.gmra.mxu0 %v1811
    %v1875 = vpop.f32.mrf.mxu0
    %v1876 = vadd.f32 %v1812, %v1875
    %v1877 = vpop.f32.mrf.mxu0
    %v1878 = vadd.f32 %v1812, %v1877
    %1879 = vdwg.mxu0
    %v1880 = vld [vmem:[%s5 + $0x2] sm:$0x1]
    %v1881 = vld [vmem:[%s5 + $0x3] sm:$0x1]
    %1882 = vadd.xlane.f32.xlu0 %v1871
    %v1883 = vpop.xlane.xlu0 %1882
    %1884 = vadd.xlane.f32.xlu0 %v1873
    %v1885 = vpop.xlane.xlu0 %1884
    %1886 = vadd.xlane.f32.xlu0 %v1876
    %v1887 = vpop.xlane.xlu0 %1886
    %1888 = vadd.xlane.f32.xlu0 %v1878
    %v1889 = vpop.xlane.xlu0 %1888
    %v1890 = vmul.f32 %v1871, %v1871
    %v1891 = vmul.f32 %v1873, %v1873
    %v1892 = vmul.f32 %v1876, %v1876
    %v1893 = vmul.f32 %v1878, %v1878
    %1894 = vadd.xlane.f32.xlu0 %v1890
    %v1895 = vpop.xlane.xlu0 %1894
    %1896 = vadd.xlane.f32.xlu0 %v1891
    %v1897 = vpop.xlane.xlu0 %1896
    %1898 = vadd.xlane.f32.xlu0 %v1892
    %v1899 = vpop.xlane.xlu0 %1898
    %1900 = vadd.xlane.f32.xlu0 %v1893
    %v1901 = vpop.xlane.xlu0 %1900
    %v1902 = vmul.f32 %v1883, 0.0078125
    %v1903 = vmul.f32 %v1885, 0.0078125
    %v1904 = vmul.f32 %v1887, 0.0078125
    %v1905 = vmul.f32 %v1889, 0.0078125
    %v1906 = vmul.f32 %v1895, 0.0078125
    %v1907 = vmul.f32 %v1897, 0.0078125
    %v1908 = vmul.f32 %v1899, 0.0078125
    %v1909 = vmul.f32 %v1901, 0.0078125
    %v1910 = vmul.f32 %v1902, %v1902
    %v1911 = vmul.f32 %v1903, %v1903
    %v1912 = vmul.f32 %v1904, %v1904
    %v1913 = vmul.f32 %v1905, %v1905
    %v1914 = vsub.f32 %v1906, %v1910
    %v1915 = vsub.f32 %v1907, %v1911
    %v1916 = vsub.f32 %v1908, %v1912
    %v1917 = vsub.f32 %v1909, %v1913
    %v1918 = vsub.f32 %v1871, %v1902
    %v1919 = vsub.f32 %v1873, %v1903
    %v1920 = vsub.f32 %v1876, %v1904
    %v1921 = vsub.f32 %v1878, %v1905
    %v1922 = vadd.f32 %v1914, 1e-05
    %v1923 = vadd.f32 %v1915, 1e-05
    %v1924 = vadd.f32 %v1916, 1e-05
    %v1925 = vadd.f32 %v1917, 1e-05
    %v1926 = vrsqrt.pop %v1922
    %v1927 = vmul.f32 %v1926, %v1922
    %v1928 = vmul.f32 %v1927, %v1926
    %v1929 = vmul.f32 0.5, %v1928
    %v1930 = vsub.f32 1.5, %v1929
    %v1931 = vmul.f32 %v1926, %v1930
    %vm1932 = vweird.f32 %v1922
    %vm1933 = vweird.f32 %v1926
    %vm1934 = vmor %vm1932, %vm1933
    %v1935 = vsel %vm1934, %v1926, %v1931
    %v1936 = vrsqrt.pop %v1923
    %v1937 = vmul.f32 %v1936, %v1923
    %v1938 = vmul.f32 %v1937, %v1936
    %v1939 = vmul.f32 0.5, %v1938
    %v1940 = vsub.f32 1.5, %v1939
    %v1941 = vmul.f32 %v1936, %v1940
    %vm1942 = vweird.f32 %v1923
    %vm1943 = vweird.f32 %v1936
    %vm1944 = vmor %vm1942, %vm1943
    %v1945 = vsel %vm1944, %v1936, %v1941
    %v1946 = vrsqrt.pop %v1924
    %v1947 = vmul.f32 %v1946, %v1924
    %v1948 = vmul.f32 %v1947, %v1946
    %v1949 = vmul.f32 0.5, %v1948
    %v1950 = vsub.f32 1.5, %v1949
    %v1951 = vmul.f32 %v1946, %v1950
    %vm1952 = vweird.f32 %v1924
    %vm1953 = vweird.f32 %v1946
    %vm1954 = vmor %vm1952, %vm1953
    %v1955 = vsel %vm1954, %v1946, %v1951
    %v1956 = vrsqrt.pop %v1925
    %v1957 = vmul.f32 %v1956, %v1925
    %v1958 = vmul.f32 %v1957, %v1956
    %v1959 = vmul.f32 0.5, %v1958
    %v1960 = vsub.f32 1.5, %v1959
    %v1961 = vmul.f32 %v1956, %v1960
    %vm1962 = vweird.f32 %v1925
    %vm1963 = vweird.f32 %v1956
    %vm1964 = vmor %vm1962, %vm1963
    %v1965 = vsel %vm1964, %v1956, %v1961
    %v1966 = vmul.f32 %v1918, %v1935
    %v1967 = vmul.f32 %v1919, %v1945
    %v1968 = vmul.f32 %v1920, %v1955
    %v1969 = vmul.f32 %v1921, %v1965
    %v1970 = vperm.slane %v1880, 0
    %v1971 = vmul.f32 %v1966, %v1970
    %v1972 = vmul.f32 %v1967, %v1970
    %v1973 = vmul.f32 %v1968, %v1970
    %v1974 = vmul.f32 %v1969, %v1970
    %v1975 = vperm.slane %v1881, 0
    %v1976 = vadd.f32 %v1971, %v1975
    %v1977 = vadd.f32 %v1972, %v1975
    %v1978 = vadd.f32 %v1973, %v1975
    %v1979 = vadd.f32 %v1974, %v1975
    %1980 = vst [vmem:[%s13] sm:$0xff] %v1976
    %1981 = vst [vmem:[%s13 + $0x8] sm:$0xff] %v1977
    %1982 = vst [vmem:[%s13 + $0x10] sm:$0xff] %v1978
    %1983 = vst [vmem:[%s13 + $0x18] sm:$0xff] %v1979
    // Predicated region
    $region50: #{siamese_forward.2} parent=1 // pred_check
      _
    $region51: #{siamese_forward.2} parent=1 // pred_check_branch
      %1985 = sbr.rel (0) target = $region53
    $region52: #{siamese_forward.2} parent=1 // pred_region
      _
    $region53: #{siamese_forward.2} parent=1 // pred_fallthru
      _
    // Predicated region
    $region54: #{siamese_forward.2} parent=1 // pred_check
      _
    $region55: #{siamese_forward.2} parent=1 // pred_check_branch
      %1987 = sbr.rel (0) target = $region57
    $region56: #{siamese_forward.2} parent=1 // pred_region
      _
    $region57: #{siamese_forward.2} parent=1 // pred_fallthru
      _
    %1988 = vsyncpa [#allocation18], 1
    %1989 = vsyncpa [#allocation20], 1

</llo_original>
